<compile_context>
chip_gen: v6e
topology: v6e:2x2x1
jax: 0.10.0
libtpu: 0.0.40
codegen_flags: <defaults>
</compile_context>

<pallas_src>
import jax
import jax.numpy as jnp
import numpy as np
from jax import lax
from jax.experimental import pallas as pl
from jax.experimental.pallas import tpu as pltpu

EPS = 1e-5  # nn.BatchNorm2d default eps


def _make_resblock_kernel(N, Ho, Wo, Cin, Cout, has_proj):
    M = N * Ho * Wo
    inv_m = 1.0 / M

    def bn(x, gamma, beta):
        # nn.BatchNorm2d training mode: per-channel biased batch statistics.
        # Single pass (sum / sum-of-squares), then 2-op/element scale+shift.
        s1 = jnp.sum(x, axis=0, keepdims=True)
        s2 = jnp.sum(x * x, axis=0, keepdims=True)
        mu = s1 * inv_m
        var = s2 * inv_m - mu * mu
        scale = gamma * lax.rsqrt(var + EPS)      # (1, C) only — EUP rsqrt
        shift = beta - mu * scale
        return x * scale + shift

    def kernel(*refs):
        if has_proj:
            (p1_ref, w1_ref, g1_ref, be1_ref,
             w2_ref, g2_ref, be2_ref,
             g0_ref, be0_ref,
             out_ref, mid_ref) = refs
        else:
            (p1_ref, w1_ref, g1_ref, be1_ref,
             w2_ref, g2_ref, be2_ref,
             skip_ref,
             out_ref, mid_ref) = refs

        # ---- conv_1 (+ fused projection skip): ONE im2col MXU matmul ---------
        # p1: (M, 9*Cin) bf16, w1: (9*Cin, Cout or 2*Cout) bf16, f32 accumulate.
        acc = jnp.dot(p1_ref[...], w1_ref[...],
                      preferred_element_type=jnp.float32)
        y1 = jnp.maximum(bn(acc[:, :Cout], g1_ref[...], be1_ref[...]), 0.0)

        # ---- zero-pad y1 into scratch: border-only zero + one interior write -
        zrow = jnp.zeros((N, 1, Wo + 2, Cout), jnp.float32)
        zcol = jnp.zeros((N, Ho + 2, 1, Cout), jnp.float32)
        mid_ref[:, 0:1, :, :] = zrow
        mid_ref[:, Ho + 1:Ho + 2, :, :] = zrow
        mid_ref[:, :, 0:1, :] = zcol
        mid_ref[:, :, Wo + 1:Wo + 2, :] = zcol
        mid_ref[:, 1:Ho + 1, 1:Wo + 1, :] = y1.reshape(N, Ho, Wo, Cout)

        # ---- conv_2: 3x3 / stride 1 as ONE im2col matmul (K = 9*Cout) --------
        taps2 = [mid_ref[:, kh:kh + Ho, kw:kw + Wo, :].reshape(M, Cout)
                 for kh in range(3) for kw in range(3)]
        patches2 = jnp.concatenate(taps2, axis=-1)            # (M, 9*Cout) f32
        acc2 = jnp.dot(patches2.astype(jnp.bfloat16), w2_ref[...],
                       preferred_element_type=jnp.float32)
        y2 = bn(acc2, g2_ref[...], be2_ref[...])

        # ---- skip connection --------------------------------------------------
        if has_proj:
            # Column block [Cout:2*Cout) of the fused conv_1 matmul == 1x1/s2 conv.
            sc = bn(acc[:, Cout:2 * Cout], g0_ref[...], be0_ref[...])
        else:
            sc = skip_ref[...]                                # exact f32 identity

        out_ref[...] = jnp.maximum(y2 + sc, 0.0)

    return kernel


def residual_block_forward(x_nchw, params, downsampling):
    """Pallas implementation of ResidualBlock.forward. x_nchw: (N, Cin, H, W) f32."""
    N, Cin, H, W = x_nchw.shape
    Cout = params["w1"].shape[0]
    has_proj = Cin != Cout
    stride = 2 if downsampling else 1
    # The PyTorch module only produces shape-consistent adds for these configs.
    assert (has_proj and stride == 2) or ((not has_proj) and stride == 1)

    Ho = (H + 2 - 3) // stride + 1
    Wo = (W + 2 - 3) // stride + 1
    M = N * Ho * Wo

    x = jnp.transpose(x_nchw, (0, 2, 3, 1)).astype(jnp.float32)   # NCHW -> NHWC
    xpad = jnp.pad(x, ((0, 0), (1, 1), (1, 1), (0, 0)))           # pad=1 for 3x3

    # conv_1 im2col built in the wrapper (XLA handles the strided slices), cast
    # to bf16 here so no input-side cast / tap slicing / lane concat in-kernel.
    taps = []
    for kh in range(3):
        for kw in range(3):
            p = xpad[:, kh:kh + (Ho - 1) * stride + 1:stride,
                     kw:kw + (Wo - 1) * stride + 1:stride, :]
            taps.append(p.reshape(M, Cin))
    patches1 = jnp.concatenate(taps, axis=-1).astype(jnp.bfloat16)  # (M, 9*Cin)

    # PyTorch conv weight (Cout, Cin, kh, kw) -> (9*Cin, Cout).  Conv biases are
    # intentionally dropped: training-mode BN cancels them exactly.
    w1m = jnp.transpose(params["w1"], (2, 3, 1, 0)).reshape(9 * Cin, Cout)
    if has_proj:
        # Fuse the projection skip: its 1x1/stride-2 conv reads exactly conv_1's
        # center tap, so place w0 in rows [4*Cin, 5*Cin) of an extra Cout block.
        w0m = jnp.transpose(params["w0"], (2, 3, 1, 0)).reshape(Cin, Cout)
        w0pad = jnp.zeros((9 * Cin, Cout), jnp.float32).at[4 * Cin:5 * Cin].set(w0m)
        w1cat = jnp.concatenate([w1m, w0pad], axis=1).astype(jnp.bfloat16)
    else:
        w1cat = w1m.astype(jnp.bfloat16)
    w2 = jnp.transpose(params["w2"], (2, 3, 1, 0)).reshape(9 * Cout, Cout).astype(jnp.bfloat16)

    def c2(v):  # per-channel BN params as (1, C) f32 rows
        return v.reshape(1, Cout).astype(jnp.float32)

    inputs = [patches1, w1cat, c2(params["g1"]), c2(params["beta1"]),
              w2, c2(params["g2"]), c2(params["beta2"])]
    if has_proj:
        inputs += [c2(params["g0"]), c2(params["beta0"])]
    else:
        inputs += [x.reshape(M, Cout)]          # exact f32 identity-skip slab

    kernel = _make_resblock_kernel(N, Ho, Wo, Cin, Cout, has_proj)

    # Scheduling hints: MXU flops of both passes + elementwise; bytes include the
    # mid-scratch round trip (1 interior store + 9 shifted tap loads).
    kcols = 2 * Cout if has_proj else Cout
    flops = 2 * M * (9 * Cin) * kcols + 2 * M * (9 * Cout) * Cout + 16 * M * Cout
    mid_bytes = N * (Ho + 2) * (Wo + 2) * Cout * 4
    io_bytes = sum(int(a.size) * a.dtype.itemsize for a in inputs) + M * Cout * 4
    bytes_accessed = int(io_bytes + 10 * mid_bytes)

    vmem_need = io_bytes + mid_bytes
    vmem_limit = int(min(100 * 2**20, max(16 * 2**20, 2 * vmem_need)))

    out2d = pl.pallas_call(
        kernel,
        out_shape=jax.ShapeDtypeStruct((M, Cout), jnp.float32),
        in_specs=[pl.BlockSpec(memory_space=pltpu.MemorySpace.VMEM) for _ in inputs],
        out_specs=pl.BlockSpec(memory_space=pltpu.MemorySpace.VMEM),
        scratch_shapes=[pltpu.VMEM((N, Ho + 2, Wo + 2, Cout), jnp.float32)],
        compiler_params=pltpu.CompilerParams(vmem_limit_bytes=vmem_limit),
        cost_estimate=pl.CostEstimate(flops=int(flops),
                                      transcendentals=(3 if has_proj else 2) * Cout,
                                      bytes_accessed=bytes_accessed),
    )(*inputs)

    out_nhwc = out2d.reshape(N, Ho, Wo, Cout)
    return jnp.transpose(out_nhwc, (0, 3, 1, 2))                   # NHWC -> NCHW


# ----------------------------- pure-JAX reference -----------------------------
def ref_forward(x, p, downsampling):
    stride = 2 if downsampling else 1
    Cin, Cout = x.shape[1], p["w1"].shape[0]

    def conv(x, w, b, s, pad):
        y = lax.conv_general_dilated(x, w, (s, s), [(pad, pad), (pad, pad)],
                                     dimension_numbers=("NCHW", "OIHW", "NCHW"))
        return y + b[None, :, None, None]

    def bn(x, g, be):
        mu = jnp.mean(x, axis=(0, 2, 3), keepdims=True)
        var = jnp.mean((x - mu) ** 2, axis=(0, 2, 3), keepdims=True)
        return (x - mu) / jnp.sqrt(var + EPS) * g[None, :, None, None] + be[None, :, None, None]

    sc = x if Cin == Cout else bn(conv(x, p["w0"], p["b0"], 2, 0), p["g0"], p["beta0"])
    h = jax.nn.relu(bn(conv(x, p["w1"], p["b1"], stride, 1), p["g1"], p["beta1"]))
    h = bn(conv(h, p["w2"], p["b2"], 1, 1), p["g2"], p["beta2"])
    return jax.nn.relu(h + sc)


# --------------------------- deterministic parameters --------------------------
def make_params(key, Cin, Cout):
    ks = jax.random.split(key, 12)

    def u(k, shape, fan_in):
        return jax.random.uniform(k, shape, jnp.float32, -1.0, 1.0) / np.sqrt(fan_in)

    p = {
        "w1": u(ks[0], (Cout, Cin, 3, 3), Cin * 9),
        "b1": u(ks[1], (Cout,), Cin * 9),
        "g1": 1.0 + 0.1 * jax.random.normal(ks[2], (Cout,), jnp.float32),
        "beta1": 0.1 * jax.random.normal(ks[3], (Cout,), jnp.float32),
        "w2": u(ks[4], (Cout, Cout, 3, 3), Cout * 9),
        "b2": u(ks[5], (Cout,), Cout * 9),
        "g2": 1.0 + 0.1 * jax.random.normal(ks[6], (Cout,), jnp.float32),
        "beta2": 0.1 * jax.random.normal(ks[7], (Cout,), jnp.float32),
    }
    if Cin != Cout:
        p.update({
            "w0": u(ks[8], (Cout, Cin, 1, 1), Cin),
            "b0": u(ks[9], (Cout,), Cin),
            "g0": 1.0 + 0.1 * jax.random.normal(ks[10], (Cout,), jnp.float32),
            "beta0": 0.1 * jax.random.normal(ks[11], (Cout,), jnp.float32),
        })
    return p


if __name__ == "__main__":
    key = jax.random.PRNGKey(0)
    kx1, kx2, kp1, kp2 = jax.random.split(key, 4)

    # Case 1: channel change + downsampling (projection skip: 1x1 conv stride 2 + BN)
    x1 = jax.random.normal(kx1, (2, 4, 16, 16), jnp.float32)
    p1 = make_params(kp1, 4, 8)
    out1 = residual_block_forward(x1, p1, downsampling=True)
    jax.block_until_ready(out1)
    assert out1.shape == (2, 8, 8, 8)
    np.testing.assert_allclose(np.asarray(out1), np.asarray(ref_forward(x1, p1, True)),
                               rtol=2e-2, atol=2e-2)

    # Case 2: identity skip (in_channels == out_channels, no downsampling)
    x2 = jax.random.normal(kx2, (2, 4, 16, 16), jnp.float32)
    p2 = make_params(kp2, 4, 4)
    out2 = residual_block_forward(x2, p2, downsampling=False)
    jax.block_until_ready(out2)
    assert out2.shape == (2, 4, 16, 16)
    np.testing.assert_allclose(np.asarray(out2), np.asarray(ref_forward(x2, p2, False)),
                               rtol=2e-2, atol=2e-2)

    print("KERNEL_OK")
</pallas_src>

<mosaic_0001>
module attributes {stable_mosaic.version = 11 : i64} {
  func.func @kernel(%arg0: memref<128x36xbf16, #tpu.memory_space<vmem>>, %arg1: memref<36x16xbf16, #tpu.memory_space<vmem>>, %arg2: memref<1x8xf32, #tpu.memory_space<vmem>>, %arg3: memref<1x8xf32, #tpu.memory_space<vmem>>, %arg4: memref<72x8xbf16, #tpu.memory_space<vmem>>, %arg5: memref<1x8xf32, #tpu.memory_space<vmem>>, %arg6: memref<1x8xf32, #tpu.memory_space<vmem>>, %arg7: memref<1x8xf32, #tpu.memory_space<vmem>>, %arg8: memref<1x8xf32, #tpu.memory_space<vmem>>, %arg9: memref<128x8xf32, #tpu.memory_space<vmem>>, %arg10: memref<2x10x10x8xf32, #tpu.memory_space<vmem>>) attributes {dimension_semantics = [], scalar_prefetch = 0 : i64, scratch_operands = 1 : i64, tpu.core_type = #tpu.core_type<tc>} {
    %c0 = arith.constant 0 : index
    %c0_0 = arith.constant 0 : index
    %0 = vector.load %arg0[%c0, %c0_0] : memref<128x36xbf16, #tpu.memory_space<vmem>>, vector<128x36xbf16>
    %c0_1 = arith.constant 0 : index
    %c0_2 = arith.constant 0 : index
    %1 = vector.load %arg1[%c0_1, %c0_2] : memref<36x16xbf16, #tpu.memory_space<vmem>>, vector<36x16xbf16>
    %cst = arith.constant dense<0.000000e+00> : vector<128x16xf32>
    %2 = tpu.matmul %0, %1, %cst {dimension_numbers = #tpu.dot_dimension_numbers<[1], [0], [0], [1], [0, 0, 1, 1], [], []>} : vector<128x36xbf16>, vector<36x16xbf16>, vector<128x16xf32> -> vector<128x16xf32>
    %3 = vector.extract_strided_slice %2 {offsets = [0, 0], sizes = [128, 8], strides = [1, 1]} : vector<128x16xf32> to vector<128x8xf32>
    %c0_3 = arith.constant 0 : index
    %c0_4 = arith.constant 0 : index
    %4 = vector.load %arg2[%c0_3, %c0_4] : memref<1x8xf32, #tpu.memory_space<vmem>>, vector<1x8xf32>
    %c0_5 = arith.constant 0 : index
    %c0_6 = arith.constant 0 : index
    %5 = vector.load %arg3[%c0_5, %c0_6] : memref<1x8xf32, #tpu.memory_space<vmem>>, vector<1x8xf32>
    %cst_7 = arith.constant dense<0.000000e+00> : vector<8xf32>
    %6 = vector.multi_reduction <add>, %3, %cst_7 [0] : vector<128x8xf32> to vector<8xf32>
    %7 = vector.shape_cast %6 : vector<8xf32> to vector<1x8xf32>
    %8 = arith.mulf %3, %3 : vector<128x8xf32>
    %cst_8 = arith.constant dense<0.000000e+00> : vector<8xf32>
    %9 = vector.multi_reduction <add>, %8, %cst_8 [0] : vector<128x8xf32> to vector<8xf32>
    %10 = vector.shape_cast %9 : vector<8xf32> to vector<1x8xf32>
    %cst_9 = arith.constant 7.812500e-03 : f32
    %11 = vector.broadcast %cst_9 : f32 to vector<1x8xf32>
    %12 = arith.mulf %7, %11 : vector<1x8xf32>
    %cst_10 = arith.constant 7.812500e-03 : f32
    %13 = vector.broadcast %cst_10 : f32 to vector<1x8xf32>
    %14 = arith.mulf %10, %13 : vector<1x8xf32>
    %15 = arith.mulf %12, %12 : vector<1x8xf32>
    %16 = arith.subf %14, %15 : vector<1x8xf32>
    %cst_11 = arith.constant 9.99999974E-6 : f32
    %17 = vector.broadcast %cst_11 : f32 to vector<1x8xf32>
    %18 = arith.addf %16, %17 : vector<1x8xf32>
    %19 = math.rsqrt %18 : vector<1x8xf32>
    %20 = arith.mulf %4, %19 : vector<1x8xf32>
    %21 = arith.mulf %12, %20 : vector<1x8xf32>
    %22 = arith.subf %5, %21 : vector<1x8xf32>
    %23 = vector.broadcast %20 : vector<1x8xf32> to vector<128x8xf32>
    %24 = arith.mulf %3, %23 : vector<128x8xf32>
    %25 = vector.broadcast %22 : vector<1x8xf32> to vector<128x8xf32>
    %26 = arith.addf %24, %25 : vector<128x8xf32>
    %cst_12 = arith.constant 0.000000e+00 : f32
    %27 = vector.broadcast %cst_12 : f32 to vector<128x8xf32>
    %28 = arith.maximumf %26, %27 : vector<128x8xf32>
    %cst_13 = arith.constant 0.000000e+00 : f32
    %29 = vector.broadcast %cst_13 : f32 to vector<2x1x10x8xf32>
    %cst_14 = arith.constant 0.000000e+00 : f32
    %30 = vector.broadcast %cst_14 : f32 to vector<2x10x1x8xf32>
    %c0_15 = arith.constant 0 : index
    %c0_16 = arith.constant 0 : index
    %c0_17 = arith.constant 0 : index
    %c0_18 = arith.constant 0 : index
    %31 = vector.load %arg10[%c0_15, %c0_16, %c0_17, %c0_18] : memref<2x10x10x8xf32, #tpu.memory_space<vmem>>, vector<2x1x10x8xf32>
    tpu.vector_store %arg10[%c0_15, %c0_16, %c0_17, %c0_18], %29 {strides = array<i32>} : memref<2x10x10x8xf32, #tpu.memory_space<vmem>>, vector<2x1x10x8xf32>,
    %c0_19 = arith.constant 0 : index
    %c9 = arith.constant 9 : index
    %c0_20 = arith.constant 0 : index
    %c0_21 = arith.constant 0 : index
    %32 = vector.load %arg10[%c0_19, %c9, %c0_20, %c0_21] : memref<2x10x10x8xf32, #tpu.memory_space<vmem>>, vector<2x1x10x8xf32>
    tpu.vector_store %arg10[%c0_19, %c9, %c0_20, %c0_21], %29 {strides = array<i32>} : memref<2x10x10x8xf32, #tpu.memory_space<vmem>>, vector<2x1x10x8xf32>,
    %c0_22 = arith.constant 0 : index
    %c0_23 = arith.constant 0 : index
    %c0_24 = arith.constant 0 : index
    %c0_25 = arith.constant 0 : index
    %33 = vector.load %arg10[%c0_22, %c0_23, %c0_24, %c0_25] : memref<2x10x10x8xf32, #tpu.memory_space<vmem>>, vector<2x10x1x8xf32>
    tpu.vector_store %arg10[%c0_22, %c0_23, %c0_24, %c0_25], %30 {strides = array<i32>} : memref<2x10x10x8xf32, #tpu.memory_space<vmem>>, vector<2x10x1x8xf32>,
    %c0_26 = arith.constant 0 : index
    %c0_27 = arith.constant 0 : index
    %c9_28 = arith.constant 9 : index
    %c0_29 = arith.constant 0 : index
    %34 = vector.load %arg10[%c0_26, %c0_27, %c9_28, %c0_29] : memref<2x10x10x8xf32, #tpu.memory_space<vmem>>, vector<2x10x1x8xf32>
    tpu.vector_store %arg10[%c0_26, %c0_27, %c9_28, %c0_29], %30 {strides = array<i32>} : memref<2x10x10x8xf32, #tpu.memory_space<vmem>>, vector<2x10x1x8xf32>,
    %35 = vector.shape_cast %28 : vector<128x8xf32> to vector<2x8x8x8xf32>
    %c0_30 = arith.constant 0 : index
    %c1 = arith.constant 1 : index
    %c1_31 = arith.constant 1 : index
    %c0_32 = arith.constant 0 : index
    %36 = vector.load %arg10[%c0_30, %c1, %c1_31, %c0_32] : memref<2x10x10x8xf32, #tpu.memory_space<vmem>>, vector<2x8x8x8xf32>
    tpu.vector_store %arg10[%c0_30, %c1, %c1_31, %c0_32], %35 {strides = array<i32>} : memref<2x10x10x8xf32, #tpu.memory_space<vmem>>, vector<2x8x8x8xf32>,
    %c0_33 = arith.constant 0 : index
    %c0_34 = arith.constant 0 : index
    %c0_35 = arith.constant 0 : index
    %c0_36 = arith.constant 0 : index
    %37 = vector.load %arg10[%c0_33, %c0_34, %c0_35, %c0_36] : memref<2x10x10x8xf32, #tpu.memory_space<vmem>>, vector<2x8x8x8xf32>
    %38 = vector.shape_cast %37 : vector<2x8x8x8xf32> to vector<128x8xf32>
    %c0_37 = arith.constant 0 : index
    %c0_38 = arith.constant 0 : index
    %c1_39 = arith.constant 1 : index
    %c0_40 = arith.constant 0 : index
    %39 = vector.load %arg10[%c0_37, %c0_38, %c1_39, %c0_40] : memref<2x10x10x8xf32, #tpu.memory_space<vmem>>, vector<2x8x8x8xf32>
    %40 = vector.shape_cast %39 : vector<2x8x8x8xf32> to vector<128x8xf32>
    %c0_41 = arith.constant 0 : index
    %c0_42 = arith.constant 0 : index
    %c2 = arith.constant 2 : index
    %c0_43 = arith.constant 0 : index
    %41 = vector.load %arg10[%c0_41, %c0_42, %c2, %c0_43] : memref<2x10x10x8xf32, #tpu.memory_space<vmem>>, vector<2x8x8x8xf32>
    %42 = vector.shape_cast %41 : vector<2x8x8x8xf32> to vector<128x8xf32>
    %c0_44 = arith.constant 0 : index
    %c1_45 = arith.constant 1 : index
    %c0_46 = arith.constant 0 : index
    %c0_47 = arith.constant 0 : index
    %43 = vector.load %arg10[%c0_44, %c1_45, %c0_46, %c0_47] : memref<2x10x10x8xf32, #tpu.memory_space<vmem>>, vector<2x8x8x8xf32>
    %44 = vector.shape_cast %43 : vector<2x8x8x8xf32> to vector<128x8xf32>
    %c0_48 = arith.constant 0 : index
    %c1_49 = arith.constant 1 : index
    %c1_50 = arith.constant 1 : index
    %c0_51 = arith.constant 0 : index
    %45 = vector.load %arg10[%c0_48, %c1_49, %c1_50, %c0_51] : memref<2x10x10x8xf32, #tpu.memory_space<vmem>>, vector<2x8x8x8xf32>
    %46 = vector.shape_cast %45 : vector<2x8x8x8xf32> to vector<128x8xf32>
    %c0_52 = arith.constant 0 : index
    %c1_53 = arith.constant 1 : index
    %c2_54 = arith.constant 2 : index
    %c0_55 = arith.constant 0 : index
    %47 = vector.load %arg10[%c0_52, %c1_53, %c2_54, %c0_55] : memref<2x10x10x8xf32, #tpu.memory_space<vmem>>, vector<2x8x8x8xf32>
    %48 = vector.shape_cast %47 : vector<2x8x8x8xf32> to vector<128x8xf32>
    %c0_56 = arith.constant 0 : index
    %c2_57 = arith.constant 2 : index
    %c0_58 = arith.constant 0 : index
    %c0_59 = arith.constant 0 : index
    %49 = vector.load %arg10[%c0_56, %c2_57, %c0_58, %c0_59] : memref<2x10x10x8xf32, #tpu.memory_space<vmem>>, vector<2x8x8x8xf32>
    %50 = vector.shape_cast %49 : vector<2x8x8x8xf32> to vector<128x8xf32>
    %c0_60 = arith.constant 0 : index
    %c2_61 = arith.constant 2 : index
    %c1_62 = arith.constant 1 : index
    %c0_63 = arith.constant 0 : index
    %51 = vector.load %arg10[%c0_60, %c2_61, %c1_62, %c0_63] : memref<2x10x10x8xf32, #tpu.memory_space<vmem>>, vector<2x8x8x8xf32>
    %52 = vector.shape_cast %51 : vector<2x8x8x8xf32> to vector<128x8xf32>
    %c0_64 = arith.constant 0 : index
    %c2_65 = arith.constant 2 : index
    %c2_66 = arith.constant 2 : index
    %c0_67 = arith.constant 0 : index
    %53 = vector.load %arg10[%c0_64, %c2_65, %c2_66, %c0_67] : memref<2x10x10x8xf32, #tpu.memory_space<vmem>>, vector<2x8x8x8xf32>
    %54 = vector.shape_cast %53 : vector<2x8x8x8xf32> to vector<128x8xf32>
    %55 = tpu.concatenate %38, %40, %42, %44, %46, %48, %50, %52, %54 in 1 : vector<128x8xf32>, vector<128x8xf32>, vector<128x8xf32>, vector<128x8xf32>, vector<128x8xf32>, vector<128x8xf32>, vector<128x8xf32>, vector<128x8xf32>, vector<128x8xf32> -> vector<128x72xf32>
    %56 = arith.truncf %55 : vector<128x72xf32> to vector<128x72xbf16>
    %c0_68 = arith.constant 0 : index
    %c0_69 = arith.constant 0 : index
    %57 = vector.load %arg4[%c0_68, %c0_69] : memref<72x8xbf16, #tpu.memory_space<vmem>>, vector<72x8xbf16>
    %cst_70 = arith.constant dense<0.000000e+00> : vector<128x8xf32>
    %58 = tpu.matmul %56, %57, %cst_70 {dimension_numbers = #tpu.dot_dimension_numbers<[1], [0], [0], [1], [0, 0, 1, 1], [], []>} : vector<128x72xbf16>, vector<72x8xbf16>, vector<128x8xf32> -> vector<128x8xf32>
    %c0_71 = arith.constant 0 : index
    %c0_72 = arith.constant 0 : index
    %59 = vector.load %arg5[%c0_71, %c0_72] : memref<1x8xf32, #tpu.memory_space<vmem>>, vector<1x8xf32>
    %c0_73 = arith.constant 0 : index
    %c0_74 = arith.constant 0 : index
    %60 = vector.load %arg6[%c0_73, %c0_74] : memref<1x8xf32, #tpu.memory_space<vmem>>, vector<1x8xf32>
    %cst_75 = arith.constant dense<0.000000e+00> : vector<8xf32>
    %61 = vector.multi_reduction <add>, %58, %cst_75 [0] : vector<128x8xf32> to vector<8xf32>
    %62 = vector.shape_cast %61 : vector<8xf32> to vector<1x8xf32>
    %63 = arith.mulf %58, %58 : vector<128x8xf32>
    %cst_76 = arith.constant dense<0.000000e+00> : vector<8xf32>
    %64 = vector.multi_reduction <add>, %63, %cst_76 [0] : vector<128x8xf32> to vector<8xf32>
    %65 = vector.shape_cast %64 : vector<8xf32> to vector<1x8xf32>
    %cst_77 = arith.constant 7.812500e-03 : f32
    %66 = vector.broadcast %cst_77 : f32 to vector<1x8xf32>
    %67 = arith.mulf %62, %66 : vector<1x8xf32>
    %cst_78 = arith.constant 7.812500e-03 : f32
    %68 = vector.broadcast %cst_78 : f32 to vector<1x8xf32>
    %69 = arith.mulf %65, %68 : vector<1x8xf32>
    %70 = arith.mulf %67, %67 : vector<1x8xf32>
    %71 = arith.subf %69, %70 : vector<1x8xf32>
    %cst_79 = arith.constant 9.99999974E-6 : f32
    %72 = vector.broadcast %cst_79 : f32 to vector<1x8xf32>
    %73 = arith.addf %71, %72 : vector<1x8xf32>
    %74 = math.rsqrt %73 : vector<1x8xf32>
    %75 = arith.mulf %59, %74 : vector<1x8xf32>
    %76 = arith.mulf %67, %75 : vector<1x8xf32>
    %77 = arith.subf %60, %76 : vector<1x8xf32>
    %78 = vector.broadcast %75 : vector<1x8xf32> to vector<128x8xf32>
    %79 = arith.mulf %58, %78 : vector<128x8xf32>
    %80 = vector.broadcast %77 : vector<1x8xf32> to vector<128x8xf32>
    %81 = arith.addf %79, %80 : vector<128x8xf32>
    %82 = vector.extract_strided_slice %2 {offsets = [0, 8], sizes = [128, 8], strides = [1, 1]} : vector<128x16xf32> to vector<128x8xf32>
    %c0_80 = arith.constant 0 : index
    %c0_81 = arith.constant 0 : index
    %83 = vector.load %arg7[%c0_80, %c0_81] : memref<1x8xf32, #tpu.memory_space<vmem>>, vector<1x8xf32>
    %c0_82 = arith.constant 0 : index
    %c0_83 = arith.constant 0 : index
    %84 = vector.load %arg8[%c0_82, %c0_83] : memref<1x8xf32, #tpu.memory_space<vmem>>, vector<1x8xf32>
    %cst_84 = arith.constant dense<0.000000e+00> : vector<8xf32>
    %85 = vector.multi_reduction <add>, %82, %cst_84 [0] : vector<128x8xf32> to vector<8xf32>
    %86 = vector.shape_cast %85 : vector<8xf32> to vector<1x8xf32>
    %87 = arith.mulf %82, %82 : vector<128x8xf32>
    %cst_85 = arith.constant dense<0.000000e+00> : vector<8xf32>
    %88 = vector.multi_reduction <add>, %87, %cst_85 [0] : vector<128x8xf32> to vector<8xf32>
    %89 = vector.shape_cast %88 : vector<8xf32> to vector<1x8xf32>
    %cst_86 = arith.constant 7.812500e-03 : f32
    %90 = vector.broadcast %cst_86 : f32 to vector<1x8xf32>
    %91 = arith.mulf %86, %90 : vector<1x8xf32>
    %cst_87 = arith.constant 7.812500e-03 : f32
    %92 = vector.broadcast %cst_87 : f32 to vector<1x8xf32>
    %93 = arith.mulf %89, %92 : vector<1x8xf32>
    %94 = arith.mulf %91, %91 : vector<1x8xf32>
    %95 = arith.subf %93, %94 : vector<1x8xf32>
    %cst_88 = arith.constant 9.99999974E-6 : f32
    %96 = vector.broadcast %cst_88 : f32 to vector<1x8xf32>
    %97 = arith.addf %95, %96 : vector<1x8xf32>
    %98 = math.rsqrt %97 : vector<1x8xf32>
    %99 = arith.mulf %83, %98 : vector<1x8xf32>
    %100 = arith.mulf %91, %99 : vector<1x8xf32>
    %101 = arith.subf %84, %100 : vector<1x8xf32>
    %102 = vector.broadcast %99 : vector<1x8xf32> to vector<128x8xf32>
    %103 = arith.mulf %82, %102 : vector<128x8xf32>
    %104 = vector.broadcast %101 : vector<1x8xf32> to vector<128x8xf32>
    %105 = arith.addf %103, %104 : vector<128x8xf32>
    %106 = arith.addf %81, %105 : vector<128x8xf32>
    %cst_89 = arith.constant 0.000000e+00 : f32
    %107 = vector.broadcast %cst_89 : f32 to vector<128x8xf32>
    %108 = arith.maximumf %106, %107 : vector<128x8xf32>
    %c0_90 = arith.constant 0 : index
    %c0_91 = arith.constant 0 : index
    %109 = vector.load %arg9[%c0_90, %c0_91] : memref<128x8xf32, #tpu.memory_space<vmem>>, vector<128x8xf32>
    tpu.vector_store %arg9[%c0_90, %c0_91], %108 {strides = array<i32>} : memref<128x8xf32, #tpu.memory_space<vmem>>, vector<128x8xf32>,
    return
  }
}

</mosaic_0001>

<llo_original>
// kernel: tpu_custom_call.1
$region0: #{tpu_custom_call.1}
  #allocation0 [shape = 'u32[]', space=smem, size = 0x4, offset = 0x4, fixed_abs, tag = 'smem constant byte address 0x4 - core index']
  #allocation1 [shape = 'u32[144,128]{1,0:T(1,128)}', space=vmem, size = 0x12000, scoped, tag = 'internal scratch']
  #allocation2 [shape = 'f32[2,10,10,8]{3,2,1,0:T(8,128)}', space=vmem, size = 0x28000, scoped, tag = 'scratch operand']
  %s0 = inlined_call_operand.vmem [shape: bf16[128,36], index: 0, kind: input, shape index: {}]
  %s1 = inlined_call_operand.vmem [shape: bf16[36,16], index: 1, kind: input, shape index: {}]
  %s2 = inlined_call_operand.vmem [shape: f32[1,8], index: 2, kind: input, shape index: {}]
  %s3 = inlined_call_operand.vmem [shape: f32[1,8], index: 3, kind: input, shape index: {}]
  %s4 = inlined_call_operand.vmem [shape: bf16[72,8], index: 4, kind: input, shape index: {}]
  %s5 = inlined_call_operand.vmem [shape: f32[1,8], index: 5, kind: input, shape index: {}]
  %s6 = inlined_call_operand.vmem [shape: f32[1,8], index: 6, kind: input, shape index: {}]
  %s7 = inlined_call_operand.vmem [shape: f32[1,8], index: 7, kind: input, shape index: {}]
  %s8 = inlined_call_operand.vmem [shape: f32[1,8], index: 8, kind: input, shape index: {}]
  %s9 = inlined_call_operand.vmem [shape: f32[128,8], index: 9, kind: output, shape index: {}]
  %s10 = sld [smem:[#allocation0]]
  $region46: #{tpu_custom_call.1} parent=0
    _
  %s12 = ssub.s32 1, %s10
  %s13 = scalar_select 0, %s12, %s10
  // Predicated region
  $region2: #{tpu_custom_call.1} parent=0 // pred_check
    _
  $region3: #{tpu_custom_call.1} parent=0 // pred_check_branch
    %15 = sbr.rel (0) target = $region5
  $region4: #{tpu_custom_call.1} parent=0 // pred_region
    _
  $region5: #{tpu_custom_call.1} parent=0 // pred_fallthru
    _
  // Predicated region
  $region6: #{tpu_custom_call.1} parent=0 // pred_check
    _
  $region7: #{tpu_custom_call.1} parent=0 // pred_check_branch
    %17 = sbr.rel (0) target = $region9
  $region8: #{tpu_custom_call.1} parent=0 // pred_region
    _
  $region9: #{tpu_custom_call.1} parent=0 // pred_fallthru
    _
  // Predicated region
  $region10: #{tpu_custom_call.1} parent=0 // pred_check
    _
  $region11: #{tpu_custom_call.1} parent=0 // pred_check_branch
    %19 = sbr.rel (0) target = $region13
  $region12: #{tpu_custom_call.1} parent=0 // pred_region
    _
  $region13: #{tpu_custom_call.1} parent=0 // pred_fallthru
    _
  // Predicated region
  $region14: #{tpu_custom_call.1} parent=0 // pred_check
    _
  $region15: #{tpu_custom_call.1} parent=0 // pred_check_branch
    %21 = sbr.rel (0) target = $region17
  $region16: #{tpu_custom_call.1} parent=0 // pred_region
    _
  $region17: #{tpu_custom_call.1} parent=0 // pred_fallthru
    _
  // Predicated region
  $region18: #{tpu_custom_call.1} parent=0 // pred_check
    _
  $region19: #{tpu_custom_call.1} parent=0 // pred_check_branch
    %23 = sbr.rel (0) target = $region21
  $region20: #{tpu_custom_call.1} parent=0 // pred_region
    _
  $region21: #{tpu_custom_call.1} parent=0 // pred_fallthru
    _
  // Predicated region
  $region22: #{tpu_custom_call.1} parent=0 // pred_check
    _
  $region23: #{tpu_custom_call.1} parent=0 // pred_check_branch
    %25 = sbr.rel (0) target = $region25
  $region24: #{tpu_custom_call.1} parent=0 // pred_region
    _
  $region25: #{tpu_custom_call.1} parent=0 // pred_fallthru
    _
  // Predicated region
  $region26: #{tpu_custom_call.1} parent=0 // pred_check
    _
  $region27: #{tpu_custom_call.1} parent=0 // pred_check_branch
    %27 = sbr.rel (0) target = $region29
  $region28: #{tpu_custom_call.1} parent=0 // pred_region
    _
  $region29: #{tpu_custom_call.1} parent=0 // pred_fallthru
    _
  // Predicated region
  $region30: #{tpu_custom_call.1} parent=0 // pred_check
    _
  $region31: #{tpu_custom_call.1} parent=0 // pred_check_branch
    %29 = sbr.rel (0) target = $region33
  $region32: #{tpu_custom_call.1} parent=0 // pred_region
    _
  $region33: #{tpu_custom_call.1} parent=0 // pred_fallthru
    _
  // Predicated region
  $region34: #{tpu_custom_call.1} parent=0 // pred_check
    _
  $region35: #{tpu_custom_call.1} parent=0 // pred_check_branch
    %31 = sbr.rel (0) target = $region37
  $region36: #{tpu_custom_call.1} parent=0 // pred_region
    _
  $region37: #{tpu_custom_call.1} parent=0 // pred_fallthru
    _
  %v33 = vld [vmem:[%s0] sm:$0xf]
  %v34 = vld [vmem:[%s0 + $0x4] sm:$0xf]
  %v35 = vld [vmem:[%s0 + $0x8] sm:$0xf]
  %v36 = vld [vmem:[%s0 + $0xc] sm:$0xf]
  %v37 = vld [vmem:[%s0 + $0x10] sm:$0xf]
  %v38 = vld [vmem:[%s0 + $0x14] sm:$0xf]
  %v39 = vld [vmem:[%s0 + $0x18] sm:$0xf]
  %v40 = vld [vmem:[%s0 + $0x1c] sm:$0xf]
  %v41 = vld [vmem:[%s0 + $0x20] sm:$0xf]
  %v42 = vld [vmem:[%s0 + $0x24] sm:$0xf]
  %v43 = vld [vmem:[%s0 + $0x28] sm:$0xf]
  %v44 = vld [vmem:[%s0 + $0x2c] sm:$0xf]
  %v45 = vld [vmem:[%s0 + $0x30] sm:$0xf]
  %v46 = vld [vmem:[%s0 + $0x34] sm:$0xf]
  %v47 = vld [vmem:[%s0 + $0x38] sm:$0xf]
  %v48 = vld [vmem:[%s0 + $0x3c] sm:$0xf]
  %v49 = vld [vmem:[%s1] sm:$0xf]
  %v50 = vld [vmem:[%s1 + $0x4] sm:$0xf]
  %v51 = vld [vmem:[%s1 + $0x8] sm:$0xf]
  %v52 = vld [vmem:[%s1 + $0xc] sm:$0xf]
  %v53 = vld [vmem:[%s1 + $0x10] sm:$0x3]
  %v70 = vunpack.c.l.b16 %v33
  %v71 = vunpack.c.l.b16 %v34
  %v72 = vunpack.c.l.b16 %v35
  %v73 = vunpack.c.l.b16 %v36
  %v74 = vunpack.c.l.b16 %v37
  %v75 = vunpack.c.l.b16 %v38
  %v76 = vunpack.c.l.b16 %v39
  %v77 = vunpack.c.l.b16 %v40
  %v78 = vunpack.c.l.b16 %v41
  %v79 = vunpack.c.l.b16 %v42
  %v80 = vunpack.c.l.b16 %v43
  %v81 = vunpack.c.l.b16 %v44
  %v82 = vunpack.c.l.b16 %v45
  %v83 = vunpack.c.l.b16 %v46
  %v84 = vunpack.c.l.b16 %v47
  %v85 = vunpack.c.l.b16 %v48
  %v86 = vpack.c.b16 %v71, %v70
  %v87 = vpack.c.b16 %v73, %v72
  %v88 = vpack.c.b16 %v75, %v74
  %v89 = vpack.c.b16 %v77, %v76
  %v90 = vpack.c.b16 %v79, %v78
  %v91 = vpack.c.b16 %v81, %v80
  %v92 = vpack.c.b16 %v83, %v82
  %v93 = vpack.c.b16 %v85, %v84
  %v99 = vunpack.c.l.b16 %v49
  %v100 = vunpack.c.l.b16 %v50
  %v101 = vunpack.c.l.b16 %v51
  %v102 = vunpack.c.l.b16 %v52
  %v103 = vunpack.c.l.b16 %v53
  %v104 = vpack.c.b16 %v100, %v99
  %v105 = vpack.c.b16 %v102, %v101
  %v106 = vpack.c.b16 %v103, %v103
  %vm109 = vcmask 293888
  %v111 = vsel %vm109, %v86, 0
  %v114 = vsel %vm109, %v87, 0
  %v117 = vsel %vm109, %v88, 0
  %v120 = vsel %vm109, %v89, 0
  %v123 = vsel %vm109, %v90, 0
  %v126 = vsel %vm109, %v91, 0
  %v129 = vsel %vm109, %v92, 0
  %v132 = vsel %vm109, %v93, 0
  %vm134 = vcmask 1041408
  %v136 = vsel %vm134, %v106, 0
  %138 = vmatprep.subr.bf16.mxu0 0
  %139 = vmatpush1.bf16.msra.mxu0 0
  %140 = vmatprep.subr.bf16.mxu0 0
  %141 = vmatpush1.bf16.msra.mxu0 0
  %142 = vmatprep.subr.bf16.mxu0 0
  %143 = vmatpush1.bf16.msra.mxu0 0
  %144 = vmatprep.subr.bf16.mxu0 0
  %145 = vmatpush1.bf16.msra.mxu0 0
  %146 = vmatprep.subr.bf16.mxu0 0
  %147 = vmatpush1.bf16.msra.mxu0 0
  %148 = vmatprep.subr.bf16.mxu0 0
  %149 = vmatpush1.bf16.msra.mxu0 %v136
  %150 = vmatprep.subr.bf16.mxu0 0
  %151 = vmatpush1.bf16.msra.mxu0 %v105
  %152 = vmatprep.subr.bf16.mxu0 0
  %153 = vmatpush1.bf16.msra.mxu0 %v104
  %154 = vmatprep.subr.bf16.mxu0 0
  %155 = vmatpush2.bf16.msra.mxu0 0
  %156 = vmatprep.subr.bf16.mxu0 0
  %157 = vmatpush2.bf16.msra.mxu0 0
  %158 = vmatprep.subr.bf16.mxu0 0
  %159 = vmatpush2.bf16.msra.mxu0 0
  %160 = vmatprep.subr.bf16.mxu0 0
  %161 = vmatpush2.bf16.msra.mxu0 0
  %162 = vmatprep.subr.bf16.mxu0 0
  %163 = vmatpush2.bf16.msra.mxu0 0
  %164 = vmatprep.subr.bf16.mxu0 0
  %165 = vmatpush2.bf16.msra.mxu0 0
  %166 = vmatprep.subr.bf16.mxu0 0
  %167 = vmatpush2.bf16.msra.mxu0 0
  %168 = vmatprep.subr.bf16.mxu0 0
  %169 = vmatpush2.bf16.msra.mxu0 0
  %170 = vmatprep.mubr.bf16.mxu0 0
  %171 = vmatmul.mubr.bf16.gmra.mxu0 %v111
  %v172 = vpop.f32.mrf.mxu0
  %v173 = vadd.f32 0.0, %v172
  %v174 = vpop.f32.mrf.mxu0
  %v175 = vpop.f32.mrf.mxu0
  %v176 = vadd.f32 0.0, %v175
  %v177 = vpop.f32.mrf.mxu0
  %178 = vmatprep.mubr.bf16.mxu0 0
  %179 = vmatmul.mubr.bf16.gmra.mxu0 %v114
  %v180 = vpop.f32.mrf.mxu0
  %v181 = vadd.f32 0.0, %v180
  %v182 = vpop.f32.mrf.mxu0
  %v183 = vpop.f32.mrf.mxu0
  %v184 = vadd.f32 0.0, %v183
  %v185 = vpop.f32.mrf.mxu0
  %186 = vmatprep.mubr.bf16.mxu0 0
  %187 = vmatmul.mubr.bf16.gmra.mxu0 %v117
  %v188 = vpop.f32.mrf.mxu0
  %v189 = vadd.f32 0.0, %v188
  %v190 = vpop.f32.mrf.mxu0
  %v191 = vpop.f32.mrf.mxu0
  %v192 = vadd.f32 0.0, %v191
  %v193 = vpop.f32.mrf.mxu0
  %194 = vmatprep.mubr.bf16.mxu0 0
  %195 = vmatmul.mubr.bf16.gmra.mxu0 %v120
  %v196 = vpop.f32.mrf.mxu0
  %v197 = vadd.f32 0.0, %v196
  %v198 = vpop.f32.mrf.mxu0
  %v199 = vpop.f32.mrf.mxu0
  %v200 = vadd.f32 0.0, %v199
  %v201 = vpop.f32.mrf.mxu0
  %202 = vmatprep.mubr.bf16.mxu0 0
  %203 = vmatmul.mubr.bf16.gmra.mxu0 %v123
  %v204 = vpop.f32.mrf.mxu0
  %v205 = vadd.f32 0.0, %v204
  %v206 = vpop.f32.mrf.mxu0
  %v207 = vpop.f32.mrf.mxu0
  %v208 = vadd.f32 0.0, %v207
  %v209 = vpop.f32.mrf.mxu0
  %210 = vmatprep.mubr.bf16.mxu0 0
  %211 = vmatmul.mubr.bf16.gmra.mxu0 %v126
  %v212 = vpop.f32.mrf.mxu0
  %v213 = vadd.f32 0.0, %v212
  %v214 = vpop.f32.mrf.mxu0
  %v215 = vpop.f32.mrf.mxu0
  %v216 = vadd.f32 0.0, %v215
  %v217 = vpop.f32.mrf.mxu0
  %218 = vmatprep.mubr.bf16.mxu0 0
  %219 = vmatmul.mubr.bf16.gmra.mxu0 %v129
  %v220 = vpop.f32.mrf.mxu0
  %v221 = vadd.f32 0.0, %v220
  %v222 = vpop.f32.mrf.mxu0
  %v223 = vpop.f32.mrf.mxu0
  %v224 = vadd.f32 0.0, %v223
  %v225 = vpop.f32.mrf.mxu0
  %226 = vmatprep.mubr.bf16.mxu0 0
  %227 = vmatmul.mubr.bf16.gmra.mxu0 %v132
  %v228 = vpop.f32.mrf.mxu0
  %v229 = vadd.f32 0.0, %v228
  %v230 = vpop.f32.mrf.mxu0
  %v231 = vpop.f32.mrf.mxu0
  %v232 = vadd.f32 0.0, %v231
  %v233 = vpop.f32.mrf.mxu0
  %234 = vdwg.mxu0
  %v235 = vld [vmem:[%s2] sm:$0x1]
  %v236 = vld [vmem:[%s3] sm:$0x1]
  %vm237 = vcmask 64512
  %v238 = vsel %vm237, %v173, 0.0
  %v239 = vsel %vm237, %v176, 0.0
  %v240 = vadd.f32 %v238, %v239
  %v241 = vsel %vm237, %v181, 0.0
  %v242 = vadd.f32 %v240, %v241
  %v243 = vsel %vm237, %v184, 0.0
  %v244 = vadd.f32 %v242, %v243
  %v245 = vsel %vm237, %v189, 0.0
  %v246 = vadd.f32 %v244, %v245
  %v247 = vsel %vm237, %v192, 0.0
  %v248 = vadd.f32 %v246, %v247
  %v249 = vsel %vm237, %v197, 0.0
  %v250 = vadd.f32 %v248, %v249
  %v251 = vsel %vm237, %v200, 0.0
  %v252 = vadd.f32 %v250, %v251
  %v253 = vsel %vm237, %v205, 0.0
  %v254 = vadd.f32 %v252, %v253
  %v255 = vsel %vm237, %v208, 0.0
  %v256 = vadd.f32 %v254, %v255
  %v257 = vsel %vm237, %v213, 0.0
  %v258 = vadd.f32 %v256, %v257
  %v259 = vsel %vm237, %v216, 0.0
  %v260 = vadd.f32 %v258, %v259
  %v261 = vsel %vm237, %v221, 0.0
  %v262 = vadd.f32 %v260, %v261
  %v263 = vsel %vm237, %v224, 0.0
  %v264 = vadd.f32 %v262, %v263
  %v265 = vsel %vm237, %v229, 0.0
  %v266 = vadd.f32 %v264, %v265
  %v267 = vsel %vm237, %v232, 0.0
  %v268 = vadd.f32 %v266, %v267
  %v269 = vrot.slane %v268, 4
  %v270 = vadd.f32 %v268, %v269
  %v271 = vrot.slane %v270, 2
  %v272 = vadd.f32 %v270, %v271
  %v273 = vrot.slane %v272, 1
  %v274 = vadd.f32 %v272, %v273
  %v275 = vmul.f32 %v173, %v173
  %v276 = vmul.f32 %v176, %v176
  %v277 = vmul.f32 %v181, %v181
  %v278 = vmul.f32 %v184, %v184
  %v279 = vmul.f32 %v189, %v189
  %v280 = vmul.f32 %v192, %v192
  %v281 = vmul.f32 %v197, %v197
  %v282 = vmul.f32 %v200, %v200
  %v283 = vmul.f32 %v205, %v205
  %v284 = vmul.f32 %v208, %v208
  %v285 = vmul.f32 %v213, %v213
  %v286 = vmul.f32 %v216, %v216
  %v287 = vmul.f32 %v221, %v221
  %v288 = vmul.f32 %v224, %v224
  %v289 = vmul.f32 %v229, %v229
  %v290 = vmul.f32 %v232, %v232
  %v291 = vsel %vm237, %v275, 0.0
  %v292 = vsel %vm237, %v276, 0.0
  %v293 = vadd.f32 %v291, %v292
  %v294 = vsel %vm237, %v277, 0.0
  %v295 = vadd.f32 %v293, %v294
  %v296 = vsel %vm237, %v278, 0.0
  %v297 = vadd.f32 %v295, %v296
  %v298 = vsel %vm237, %v279, 0.0
  %v299 = vadd.f32 %v297, %v298
  %v300 = vsel %vm237, %v280, 0.0
  %v301 = vadd.f32 %v299, %v300
  %v302 = vsel %vm237, %v281, 0.0
  %v303 = vadd.f32 %v301, %v302
  %v304 = vsel %vm237, %v282, 0.0
  %v305 = vadd.f32 %v303, %v304
  %v306 = vsel %vm237, %v283, 0.0
  %v307 = vadd.f32 %v305, %v306
  %v308 = vsel %vm237, %v284, 0.0
  %v309 = vadd.f32 %v307, %v308
  %v310 = vsel %vm237, %v285, 0.0
  %v311 = vadd.f32 %v309, %v310
  %v312 = vsel %vm237, %v286, 0.0
  %v313 = vadd.f32 %v311, %v312
  %v314 = vsel %vm237, %v287, 0.0
  %v315 = vadd.f32 %v313, %v314
  %v316 = vsel %vm237, %v288, 0.0
  %v317 = vadd.f32 %v315, %v316
  %v318 = vsel %vm237, %v289, 0.0
  %v319 = vadd.f32 %v317, %v318
  %v320 = vsel %vm237, %v290, 0.0
  %v321 = vadd.f32 %v319, %v320
  %v322 = vrot.slane %v321, 4
  %v323 = vadd.f32 %v321, %v322
  %v324 = vrot.slane %v323, 2
  %v325 = vadd.f32 %v323, %v324
  %v326 = vrot.slane %v325, 1
  %v327 = vadd.f32 %v325, %v326
  %v328 = vmul.f32 %v274, 0.0078125
  %v329 = vmul.f32 %v327, 0.0078125
  %v330 = vmul.f32 %v328, %v328
  %v331 = vsub.f32 %v329, %v330
  %v332 = vadd.f32 %v331, 1e-05
  %v333 = vrsqrt.pop %v332
  %v334 = vmul.f32 %v235, %v333
  %v335 = vmul.f32 %v328, %v334
  %v336 = vsub.f32 %v236, %v335
  %v338 = vlaneseq
  %v339 = vshrl.u32 %v338, 7
  %v340 = vsub.s32 0, %v339
  %v341 = vrot.slane %v334, %v340
  %v343 = vmul.f32 %v173, %v341
  %v344 = vmul.f32 %v176, %v341
  %v345 = vmul.f32 %v181, %v341
  %v346 = vmul.f32 %v184, %v341
  %v347 = vmul.f32 %v189, %v341
  %v348 = vmul.f32 %v192, %v341
  %v349 = vmul.f32 %v197, %v341
  %v350 = vmul.f32 %v200, %v341
  %v351 = vmul.f32 %v205, %v341
  %v352 = vmul.f32 %v208, %v341
  %v353 = vmul.f32 %v213, %v341
  %v354 = vmul.f32 %v216, %v341
  %v355 = vmul.f32 %v221, %v341
  %v356 = vmul.f32 %v224, %v341
  %v357 = vmul.f32 %v229, %v341
  %v358 = vmul.f32 %v232, %v341
  %v360 = vlaneseq
  %v361 = vshrl.u32 %v360, 7
  %v362 = vsub.s32 0, %v361
  %v363 = vrot.slane %v336, %v362
  %v365 = vadd.f32 %v343, %v363
  %v366 = vadd.f32 %v344, %v363
  %v367 = vadd.f32 %v345, %v363
  %v368 = vadd.f32 %v346, %v363
  %v369 = vadd.f32 %v347, %v363
  %v370 = vadd.f32 %v348, %v363
  %v371 = vadd.f32 %v349, %v363
  %v372 = vadd.f32 %v350, %v363
  %v373 = vadd.f32 %v351, %v363
  %v374 = vadd.f32 %v352, %v363
  %v375 = vadd.f32 %v353, %v363
  %v376 = vadd.f32 %v354, %v363
  %v377 = vadd.f32 %v355, %v363
  %v378 = vadd.f32 %v356, %v363
  %v379 = vadd.f32 %v357, %v363
  %v380 = vadd.f32 %v358, %v363
  %v381 = vmax.f32 %v365, 0.0
  %v382 = vmax.f32 %v366, 0.0
  %v383 = vmax.f32 %v367, 0.0
  %v384 = vmax.f32 %v368, 0.0
  %v385 = vmax.f32 %v369, 0.0
  %v386 = vmax.f32 %v370, 0.0
  %v387 = vmax.f32 %v371, 0.0
  %v388 = vmax.f32 %v372, 0.0
  %v389 = vmax.f32 %v373, 0.0
  %v390 = vmax.f32 %v374, 0.0
  %v391 = vmax.f32 %v375, 0.0
  %v392 = vmax.f32 %v376, 0.0
  %v393 = vmax.f32 %v377, 0.0
  %v394 = vmax.f32 %v378, 0.0
  %v395 = vmax.f32 %v379, 0.0
  %v396 = vmax.f32 %v380, 0.0
  %397 = vst.msk [vmem:[#allocation2] sm:$0xff] %vm237, 0.0
  %vm398 = vcmask 58368
  %399 = vst.msk [vmem:[#allocation2 + $0x8] sm:$0x3] %vm398, 0.0
  %400 = vst.msk [vmem:[#allocation2 + $0xa0] sm:$0xff] %vm237, 0.0
  %401 = vst.msk [vmem:[#allocation2 + $0xa8] sm:$0x3] %vm398, 0.0
  %s402 = scalar_lea.vmem [#allocation2], 144
  %403 = vst.msk [vmem:[%s402] sm:$0xff] %vm237, 0.0
  %404 = vst.msk [vmem:[%s402 + $0x8] sm:$0x3] %vm398, 0.0
  %405 = vst.msk [vmem:[%s402 + $0xa0] sm:$0xff] %vm237, 0.0
  %406 = vst.msk [vmem:[%s402 + $0xa8] sm:$0x3] %vm398, 0.0
  %vm407 = vcmask 57344
  %408 = vst.msk [vmem:[#allocation2] sm:$0x1] %vm407, 0.0
  %409 = vst.msk [vmem:[#allocation2 + $0x10] sm:$0x1] %vm407, 0.0
  %410 = vst.msk [vmem:[#allocation2 + $0x20] sm:$0x1] %vm407, 0.0
  %411 = vst.msk [vmem:[#allocation2 + $0x30] sm:$0x1] %vm407, 0.0
  %412 = vst.msk [vmem:[#allocation2 + $0x40] sm:$0x1] %vm407, 0.0
  %413 = vst.msk [vmem:[#allocation2 + $0x50] sm:$0x1] %vm407, 0.0
  %414 = vst.msk [vmem:[#allocation2 + $0x60] sm:$0x1] %vm407, 0.0
  %415 = vst.msk [vmem:[#allocation2 + $0x70] sm:$0x1] %vm407, 0.0
  %416 = vst.msk [vmem:[#allocation2 + $0x80] sm:$0x1] %vm407, 0.0
  %417 = vst.msk [vmem:[#allocation2 + $0x90] sm:$0x1] %vm407, 0.0
  %418 = vst.msk [vmem:[#allocation2 + $0xa0] sm:$0x1] %vm407, 0.0
  %419 = vst.msk [vmem:[#allocation2 + $0xb0] sm:$0x1] %vm407, 0.0
  %420 = vst.msk [vmem:[#allocation2 + $0xc0] sm:$0x1] %vm407, 0.0
  %421 = vst.msk [vmem:[#allocation2 + $0xd0] sm:$0x1] %vm407, 0.0
  %422 = vst.msk [vmem:[#allocation2 + $0xe0] sm:$0x1] %vm407, 0.0
  %423 = vst.msk [vmem:[#allocation2 + $0xf0] sm:$0x1] %vm407, 0.0
  %424 = vst.msk [vmem:[#allocation2 + $0x100] sm:$0x1] %vm407, 0.0
  %425 = vst.msk [vmem:[#allocation2 + $0x110] sm:$0x1] %vm407, 0.0
  %426 = vst.msk [vmem:[#allocation2 + $0x120] sm:$0x1] %vm407, 0.0
  %427 = vst.msk [vmem:[#allocation2 + $0x130] sm:$0x1] %vm407, 0.0
  %428 = vst.msk [vmem:[#allocation2 + $0x9] sm:$0x1] %vm407, 0.0
  %429 = vst.msk [vmem:[#allocation2 + $0x19] sm:$0x1] %vm407, 0.0
  %430 = vst.msk [vmem:[#allocation2 + $0x29] sm:$0x1] %vm407, 0.0
  %431 = vst.msk [vmem:[#allocation2 + $0x39] sm:$0x1] %vm407, 0.0
  %432 = vst.msk [vmem:[#allocation2 + $0x49] sm:$0x1] %vm407, 0.0
  %433 = vst.msk [vmem:[#allocation2 + $0x59] sm:$0x1] %vm407, 0.0
  %434 = vst.msk [vmem:[#allocation2 + $0x69] sm:$0x1] %vm407, 0.0
  %435 = vst.msk [vmem:[#allocation2 + $0x79] sm:$0x1] %vm407, 0.0
  %436 = vst.msk [vmem:[#allocation2 + $0x89] sm:$0x1] %vm407, 0.0
  %437 = vst.msk [vmem:[#allocation2 + $0x99] sm:$0x1] %vm407, 0.0
  %438 = vst.msk [vmem:[#allocation2 + $0xa9] sm:$0x1] %vm407, 0.0
  %439 = vst.msk [vmem:[#allocation2 + $0xb9] sm:$0x1] %vm407, 0.0
  %440 = vst.msk [vmem:[#allocation2 + $0xc9] sm:$0x1] %vm407, 0.0
  %441 = vst.msk [vmem:[#allocation2 + $0xd9] sm:$0x1] %vm407, 0.0
  %442 = vst.msk [vmem:[#allocation2 + $0xe9] sm:$0x1] %vm407, 0.0
  %443 = vst.msk [vmem:[#allocation2 + $0xf9] sm:$0x1] %vm407, 0.0
  %444 = vst.msk [vmem:[#allocation2 + $0x109] sm:$0x1] %vm407, 0.0
  %445 = vst.msk [vmem:[#allocation2 + $0x119] sm:$0x1] %vm407, 0.0
  %446 = vst.msk [vmem:[#allocation2 + $0x129] sm:$0x1] %vm407, 0.0
  %447 = vst.msk [vmem:[#allocation2 + $0x139] sm:$0x1] %vm407, 0.0
  %s448 = scalar_lea.vmem [#allocation2], 16
  %449 = vst.msk [vmem:[%s448 + $0x1] sm:$0xff] %vm237, %v381
  %450 = vst.msk [vmem:[%s448 + $0x11] sm:$0xff] %vm237, %v382
  %451 = vst.msk [vmem:[%s448 + $0x21] sm:$0xff] %vm237, %v383
  %452 = vst.msk [vmem:[%s448 + $0x31] sm:$0xff] %vm237, %v384
  %453 = vst.msk [vmem:[%s448 + $0x41] sm:$0xff] %vm237, %v385
  %454 = vst.msk [vmem:[%s448 + $0x51] sm:$0xff] %vm237, %v386
  %455 = vst.msk [vmem:[%s448 + $0x61] sm:$0xff] %vm237, %v387
  %456 = vst.msk [vmem:[%s448 + $0x71] sm:$0xff] %vm237, %v388
  %457 = vst.msk [vmem:[%s448 + $0xa1] sm:$0xff] %vm237, %v389
  %458 = vst.msk [vmem:[%s448 + $0xb1] sm:$0xff] %vm237, %v390
  %459 = vst.msk [vmem:[%s448 + $0xc1] sm:$0xff] %vm237, %v391
  %460 = vst.msk [vmem:[%s448 + $0xd1] sm:$0xff] %vm237, %v392
  %461 = vst.msk [vmem:[%s448 + $0xe1] sm:$0xff] %vm237, %v393
  %462 = vst.msk [vmem:[%s448 + $0xf1] sm:$0xff] %vm237, %v394
  %463 = vst.msk [vmem:[%s448 + $0x101] sm:$0xff] %vm237, %v395
  %464 = vst.msk [vmem:[%s448 + $0x111] sm:$0xff] %vm237, %v396
  %v465 = vld [vmem:[#allocation2] sm:$0xff]
  %v466 = vld [vmem:[#allocation2 + $0x10] sm:$0xff]
  %v467 = vld [vmem:[#allocation2 + $0x20] sm:$0xff]
  %v468 = vld [vmem:[#allocation2 + $0x30] sm:$0xff]
  %v469 = vld [vmem:[#allocation2 + $0x40] sm:$0xff]
  %v470 = vld [vmem:[#allocation2 + $0x50] sm:$0xff]
  %v471 = vld [vmem:[#allocation2 + $0x60] sm:$0xff]
  %v472 = vld [vmem:[#allocation2 + $0x70] sm:$0xff]
  %v473 = vld [vmem:[#allocation2 + $0xa0] sm:$0xff]
  %v474 = vld [vmem:[#allocation2 + $0xb0] sm:$0xff]
  %v475 = vld [vmem:[#allocation2 + $0xc0] sm:$0xff]
  %v476 = vld [vmem:[#allocation2 + $0xd0] sm:$0xff]
  %v477 = vld [vmem:[#allocation2 + $0xe0] sm:$0xff]
  %v478 = vld [vmem:[#allocation2 + $0xf0] sm:$0xff]
  %v479 = vld [vmem:[#allocation2 + $0x100] sm:$0xff]
  %v480 = vld [vmem:[#allocation2 + $0x110] sm:$0xff]
  %v481 = vld [vmem:[#allocation2 + $0x1] sm:$0xff]
  %v482 = vld [vmem:[#allocation2 + $0x11] sm:$0xff]
  %v483 = vld [vmem:[#allocation2 + $0x21] sm:$0xff]
  %v484 = vld [vmem:[#allocation2 + $0x31] sm:$0xff]
  %v485 = vld [vmem:[#allocation2 + $0x41] sm:$0xff]
  %v486 = vld [vmem:[#allocation2 + $0x51] sm:$0xff]
  %v487 = vld [vmem:[#allocation2 + $0x61] sm:$0xff]
  %v488 = vld [vmem:[#allocation2 + $0x71] sm:$0xff]
  %v489 = vld [vmem:[#allocation2 + $0xa1] sm:$0xff]
  %v490 = vld [vmem:[#allocation2 + $0xb1] sm:$0xff]
  %v491 = vld [vmem:[#allocation2 + $0xc1] sm:$0xff]
  %v492 = vld [vmem:[#allocation2 + $0xd1] sm:$0xff]
  %v493 = vld [vmem:[#allocation2 + $0xe1] sm:$0xff]
  %v494 = vld [vmem:[#allocation2 + $0xf1] sm:$0xff]
  %v495 = vld [vmem:[#allocation2 + $0x101] sm:$0xff]
  %v496 = vld [vmem:[#allocation2 + $0x111] sm:$0xff]
  %v497 = vld [vmem:[#allocation2 + $0x2] sm:$0xff]
  %v498 = vld [vmem:[#allocation2 + $0x12] sm:$0xff]
  %v499 = vld [vmem:[#allocation2 + $0x22] sm:$0xff]
  %v500 = vld [vmem:[#allocation2 + $0x32] sm:$0xff]
  %v501 = vld [vmem:[#allocation2 + $0x42] sm:$0xff]
  %v502 = vld [vmem:[#allocation2 + $0x52] sm:$0xff]
  %v503 = vld [vmem:[#allocation2 + $0x62] sm:$0xff]
  %v504 = vld [vmem:[#allocation2 + $0x72] sm:$0xff]
  %v505 = vld [vmem:[#allocation2 + $0xa2] sm:$0xff]
  %v506 = vld [vmem:[#allocation2 + $0xb2] sm:$0xff]
  %v507 = vld [vmem:[#allocation2 + $0xc2] sm:$0xff]
  %v508 = vld [vmem:[#allocation2 + $0xd2] sm:$0xff]
  %v509 = vld [vmem:[#allocation2 + $0xe2] sm:$0xff]
  %v510 = vld [vmem:[#allocation2 + $0xf2] sm:$0xff]
  %v511 = vld [vmem:[#allocation2 + $0x102] sm:$0xff]
  %v512 = vld [vmem:[#allocation2 + $0x112] sm:$0xff]
  %v513 = vld [vmem:[%s448] sm:$0xff]
  %v514 = vld [vmem:[%s448 + $0x10] sm:$0xff]
  %v515 = vld [vmem:[%s448 + $0x20] sm:$0xff]
  %v516 = vld [vmem:[%s448 + $0x30] sm:$0xff]
  %v517 = vld [vmem:[%s448 + $0x40] sm:$0xff]
  %v518 = vld [vmem:[%s448 + $0x50] sm:$0xff]
  %v519 = vld [vmem:[%s448 + $0x60] sm:$0xff]
  %v520 = vld [vmem:[%s448 + $0x70] sm:$0xff]
  %v521 = vld [vmem:[%s448 + $0xa0] sm:$0xff]
  %v522 = vld [vmem:[%s448 + $0xb0] sm:$0xff]
  %v523 = vld [vmem:[%s448 + $0xc0] sm:$0xff]
  %v524 = vld [vmem:[%s448 + $0xd0] sm:$0xff]
  %v525 = vld [vmem:[%s448 + $0xe0] sm:$0xff]
  %v526 = vld [vmem:[%s448 + $0xf0] sm:$0xff]
  %v527 = vld [vmem:[%s448 + $0x100] sm:$0xff]
  %v528 = vld [vmem:[%s448 + $0x110] sm:$0xff]
  %v529 = vld [vmem:[%s448 + $0x1] sm:$0xff]
  %v530 = vld [vmem:[%s448 + $0x11] sm:$0xff]
  %v531 = vld [vmem:[%s448 + $0x21] sm:$0xff]
  %v532 = vld [vmem:[%s448 + $0x31] sm:$0xff]
  %v533 = vld [vmem:[%s448 + $0x41] sm:$0xff]
  %v534 = vld [vmem:[%s448 + $0x51] sm:$0xff]
  %v535 = vld [vmem:[%s448 + $0x61] sm:$0xff]
  %v536 = vld [vmem:[%s448 + $0x71] sm:$0xff]
  %v537 = vld [vmem:[%s448 + $0xa1] sm:$0xff]
  %v538 = vld [vmem:[%s448 + $0xb1] sm:$0xff]
  %v539 = vld [vmem:[%s448 + $0xc1] sm:$0xff]
  %v540 = vld [vmem:[%s448 + $0xd1] sm:$0xff]
  %v541 = vld [vmem:[%s448 + $0xe1] sm:$0xff]
  %v542 = vld [vmem:[%s448 + $0xf1] sm:$0xff]
  %v543 = vld [vmem:[%s448 + $0x101] sm:$0xff]
  %v544 = vld [vmem:[%s448 + $0x111] sm:$0xff]
  %v545 = vld [vmem:[%s448 + $0x2] sm:$0xff]
  %v546 = vld [vmem:[%s448 + $0x12] sm:$0xff]
  %v547 = vld [vmem:[%s448 + $0x22] sm:$0xff]
  %v548 = vld [vmem:[%s448 + $0x32] sm:$0xff]
  %v549 = vld [vmem:[%s448 + $0x42] sm:$0xff]
  %v550 = vld [vmem:[%s448 + $0x52] sm:$0xff]
  %v551 = vld [vmem:[%s448 + $0x62] sm:$0xff]
  %v552 = vld [vmem:[%s448 + $0x72] sm:$0xff]
  %v553 = vld [vmem:[%s448 + $0xa2] sm:$0xff]
  %v554 = vld [vmem:[%s448 + $0xb2] sm:$0xff]
  %v555 = vld [vmem:[%s448 + $0xc2] sm:$0xff]
  %v556 = vld [vmem:[%s448 + $0xd2] sm:$0xff]
  %v557 = vld [vmem:[%s448 + $0xe2] sm:$0xff]
  %v558 = vld [vmem:[%s448 + $0xf2] sm:$0xff]
  %v559 = vld [vmem:[%s448 + $0x102] sm:$0xff]
  %v560 = vld [vmem:[%s448 + $0x112] sm:$0xff]
  %s561 = scalar_lea.vmem [#allocation2], 32
  %v562 = vld [vmem:[%s561] sm:$0xff]
  %v563 = vld [vmem:[%s561 + $0x10] sm:$0xff]
  %v564 = vld [vmem:[%s561 + $0x20] sm:$0xff]
  %v565 = vld [vmem:[%s561 + $0x30] sm:$0xff]
  %v566 = vld [vmem:[%s561 + $0x40] sm:$0xff]
  %v567 = vld [vmem:[%s561 + $0x50] sm:$0xff]
  %v568 = vld [vmem:[%s561 + $0x60] sm:$0xff]
  %v569 = vld [vmem:[%s561 + $0x70] sm:$0xff]
  %v570 = vld [vmem:[%s561 + $0xa0] sm:$0xff]
  %v571 = vld [vmem:[%s561 + $0xb0] sm:$0xff]
  %v572 = vld [vmem:[%s561 + $0xc0] sm:$0xff]
  %v573 = vld [vmem:[%s561 + $0xd0] sm:$0xff]
  %v574 = vld [vmem:[%s561 + $0xe0] sm:$0xff]
  %v575 = vld [vmem:[%s561 + $0xf0] sm:$0xff]
  %v576 = vld [vmem:[%s561 + $0x100] sm:$0xff]
  %v577 = vld [vmem:[%s561 + $0x110] sm:$0xff]
  %v578 = vld [vmem:[%s561 + $0x1] sm:$0xff]
  %v579 = vld [vmem:[%s561 + $0x11] sm:$0xff]
  %v580 = vld [vmem:[%s561 + $0x21] sm:$0xff]
  %v581 = vld [vmem:[%s561 + $0x31] sm:$0xff]
  %v582 = vld [vmem:[%s561 + $0x41] sm:$0xff]
  %v583 = vld [vmem:[%s561 + $0x51] sm:$0xff]
  %v584 = vld [vmem:[%s561 + $0x61] sm:$0xff]
  %v585 = vld [vmem:[%s561 + $0x71] sm:$0xff]
  %v586 = vld [vmem:[%s561 + $0xa1] sm:$0xff]
  %v587 = vld [vmem:[%s561 + $0xb1] sm:$0xff]
  %v588 = vld [vmem:[%s561 + $0xc1] sm:$0xff]
  %v589 = vld [vmem:[%s561 + $0xd1] sm:$0xff]
  %v590 = vld [vmem:[%s561 + $0xe1] sm:$0xff]
  %v591 = vld [vmem:[%s561 + $0xf1] sm:$0xff]
  %v592 = vld [vmem:[%s561 + $0x101] sm:$0xff]
  %v593 = vld [vmem:[%s561 + $0x111] sm:$0xff]
  %v594 = vld [vmem:[%s561 + $0x2] sm:$0xff]
  %v595 = vld [vmem:[%s561 + $0x12] sm:$0xff]
  %v596 = vld [vmem:[%s561 + $0x22] sm:$0xff]
  %v597 = vld [vmem:[%s561 + $0x32] sm:$0xff]
  %v598 = vld [vmem:[%s561 + $0x42] sm:$0xff]
  %v599 = vld [vmem:[%s561 + $0x52] sm:$0xff]
  %v600 = vld [vmem:[%s561 + $0x62] sm:$0xff]
  %v601 = vld [vmem:[%s561 + $0x72] sm:$0xff]
  %v602 = vld [vmem:[%s561 + $0xa2] sm:$0xff]
  %v603 = vld [vmem:[%s561 + $0xb2] sm:$0xff]
  %v604 = vld [vmem:[%s561 + $0xc2] sm:$0xff]
  %v605 = vld [vmem:[%s561 + $0xd2] sm:$0xff]
  %v606 = vld [vmem:[%s561 + $0xe2] sm:$0xff]
  %v607 = vld [vmem:[%s561 + $0xf2] sm:$0xff]
  %v608 = vld [vmem:[%s561 + $0x102] sm:$0xff]
  %v609 = vld [vmem:[%s561 + $0x112] sm:$0xff]
  %626 = vrot.lane.b32.xlu0 %v481, 8
  %v627 = vpop.permute.xlu0 %626
  %628 = vrot.lane.b32.xlu0 %v482, 8
  %v629 = vpop.permute.xlu0 %628
  %630 = vrot.lane.b32.xlu0 %v483, 8
  %v631 = vpop.permute.xlu0 %630
  %632 = vrot.lane.b32.xlu0 %v484, 8
  %v633 = vpop.permute.xlu0 %632
  %634 = vrot.lane.b32.xlu0 %v485, 8
  %v635 = vpop.permute.xlu0 %634
  %636 = vrot.lane.b32.xlu0 %v486, 8
  %v637 = vpop.permute.xlu0 %636
  %638 = vrot.lane.b32.xlu0 %v487, 8
  %v639 = vpop.permute.xlu0 %638
  %640 = vrot.lane.b32.xlu0 %v488, 8
  %v641 = vpop.permute.xlu0 %640
  %642 = vrot.lane.b32.xlu0 %v489, 8
  %v643 = vpop.permute.xlu0 %642
  %644 = vrot.lane.b32.xlu0 %v490, 8
  %v645 = vpop.permute.xlu0 %644
  %646 = vrot.lane.b32.xlu0 %v491, 8
  %v647 = vpop.permute.xlu0 %646
  %648 = vrot.lane.b32.xlu0 %v492, 8
  %v649 = vpop.permute.xlu0 %648
  %650 = vrot.lane.b32.xlu0 %v493, 8
  %v651 = vpop.permute.xlu0 %650
  %652 = vrot.lane.b32.xlu0 %v494, 8
  %v653 = vpop.permute.xlu0 %652
  %654 = vrot.lane.b32.xlu0 %v495, 8
  %v655 = vpop.permute.xlu0 %654
  %656 = vrot.lane.b32.xlu0 %v496, 8
  %v657 = vpop.permute.xlu0 %656
  %690 = vrot.lane.b32.xlu0 %v497, 16
  %v691 = vpop.permute.xlu0 %690
  %692 = vrot.lane.b32.xlu0 %v498, 16
  %v693 = vpop.permute.xlu0 %692
  %694 = vrot.lane.b32.xlu0 %v499, 16
  %v695 = vpop.permute.xlu0 %694
  %696 = vrot.lane.b32.xlu0 %v500, 16
  %v697 = vpop.permute.xlu0 %696
  %698 = vrot.lane.b32.xlu0 %v501, 16
  %v699 = vpop.permute.xlu0 %698
  %700 = vrot.lane.b32.xlu0 %v502, 16
  %v701 = vpop.permute.xlu0 %700
  %702 = vrot.lane.b32.xlu0 %v503, 16
  %v703 = vpop.permute.xlu0 %702
  %704 = vrot.lane.b32.xlu0 %v504, 16
  %v705 = vpop.permute.xlu0 %704
  %706 = vrot.lane.b32.xlu0 %v505, 16
  %v707 = vpop.permute.xlu0 %706
  %708 = vrot.lane.b32.xlu0 %v506, 16
  %v709 = vpop.permute.xlu0 %708
  %710 = vrot.lane.b32.xlu0 %v507, 16
  %v711 = vpop.permute.xlu0 %710
  %712 = vrot.lane.b32.xlu0 %v508, 16
  %v713 = vpop.permute.xlu0 %712
  %714 = vrot.lane.b32.xlu0 %v509, 16
  %v715 = vpop.permute.xlu0 %714
  %716 = vrot.lane.b32.xlu0 %v510, 16
  %v717 = vpop.permute.xlu0 %716
  %718 = vrot.lane.b32.xlu0 %v511, 16
  %v719 = vpop.permute.xlu0 %718
  %720 = vrot.lane.b32.xlu0 %v512, 16
  %v721 = vpop.permute.xlu0 %720
  %754 = vrot.lane.b32.xlu0 %v513, 24
  %v755 = vpop.permute.xlu0 %754
  %756 = vrot.lane.b32.xlu0 %v514, 24
  %v757 = vpop.permute.xlu0 %756
  %758 = vrot.lane.b32.xlu0 %v515, 24
  %v759 = vpop.permute.xlu0 %758
  %760 = vrot.lane.b32.xlu0 %v516, 24
  %v761 = vpop.permute.xlu0 %760
  %762 = vrot.lane.b32.xlu0 %v517, 24
  %v763 = vpop.permute.xlu0 %762
  %764 = vrot.lane.b32.xlu0 %v518, 24
  %v765 = vpop.permute.xlu0 %764
  %766 = vrot.lane.b32.xlu0 %v519, 24
  %v767 = vpop.permute.xlu0 %766
  %768 = vrot.lane.b32.xlu0 %v520, 24
  %v769 = vpop.permute.xlu0 %768
  %770 = vrot.lane.b32.xlu0 %v521, 24
  %v771 = vpop.permute.xlu0 %770
  %772 = vrot.lane.b32.xlu0 %v522, 24
  %v773 = vpop.permute.xlu0 %772
  %774 = vrot.lane.b32.xlu0 %v523, 24
  %v775 = vpop.permute.xlu0 %774
  %776 = vrot.lane.b32.xlu0 %v524, 24
  %v777 = vpop.permute.xlu0 %776
  %778 = vrot.lane.b32.xlu0 %v525, 24
  %v779 = vpop.permute.xlu0 %778
  %780 = vrot.lane.b32.xlu0 %v526, 24
  %v781 = vpop.permute.xlu0 %780
  %782 = vrot.lane.b32.xlu0 %v527, 24
  %v783 = vpop.permute.xlu0 %782
  %784 = vrot.lane.b32.xlu0 %v528, 24
  %v785 = vpop.permute.xlu0 %784
  %818 = vrot.lane.b32.xlu0 %v529, 32
  %v819 = vpop.permute.xlu0 %818
  %820 = vrot.lane.b32.xlu0 %v530, 32
  %v821 = vpop.permute.xlu0 %820
  %822 = vrot.lane.b32.xlu0 %v531, 32
  %v823 = vpop.permute.xlu0 %822
  %824 = vrot.lane.b32.xlu0 %v532, 32
  %v825 = vpop.permute.xlu0 %824
  %826 = vrot.lane.b32.xlu0 %v533, 32
  %v827 = vpop.permute.xlu0 %826
  %828 = vrot.lane.b32.xlu0 %v534, 32
  %v829 = vpop.permute.xlu0 %828
  %830 = vrot.lane.b32.xlu0 %v535, 32
  %v831 = vpop.permute.xlu0 %830
  %832 = vrot.lane.b32.xlu0 %v536, 32
  %v833 = vpop.permute.xlu0 %832
  %834 = vrot.lane.b32.xlu0 %v537, 32
  %v835 = vpop.permute.xlu0 %834
  %836 = vrot.lane.b32.xlu0 %v538, 32
  %v837 = vpop.permute.xlu0 %836
  %838 = vrot.lane.b32.xlu0 %v539, 32
  %v839 = vpop.permute.xlu0 %838
  %840 = vrot.lane.b32.xlu0 %v540, 32
  %v841 = vpop.permute.xlu0 %840
  %842 = vrot.lane.b32.xlu0 %v541, 32
  %v843 = vpop.permute.xlu0 %842
  %844 = vrot.lane.b32.xlu0 %v542, 32
  %v845 = vpop.permute.xlu0 %844
  %846 = vrot.lane.b32.xlu0 %v543, 32
  %v847 = vpop.permute.xlu0 %846
  %848 = vrot.lane.b32.xlu0 %v544, 32
  %v849 = vpop.permute.xlu0 %848
  %882 = vrot.lane.b32.xlu0 %v545, 40
  %v883 = vpop.permute.xlu0 %882
  %884 = vrot.lane.b32.xlu0 %v546, 40
  %v885 = vpop.permute.xlu0 %884
  %886 = vrot.lane.b32.xlu0 %v547, 40
  %v887 = vpop.permute.xlu0 %886
  %888 = vrot.lane.b32.xlu0 %v548, 40
  %v889 = vpop.permute.xlu0 %888
  %890 = vrot.lane.b32.xlu0 %v549, 40
  %v891 = vpop.permute.xlu0 %890
  %892 = vrot.lane.b32.xlu0 %v550, 40
  %v893 = vpop.permute.xlu0 %892
  %894 = vrot.lane.b32.xlu0 %v551, 40
  %v895 = vpop.permute.xlu0 %894
  %896 = vrot.lane.b32.xlu0 %v552, 40
  %v897 = vpop.permute.xlu0 %896
  %898 = vrot.lane.b32.xlu0 %v553, 40
  %v899 = vpop.permute.xlu0 %898
  %900 = vrot.lane.b32.xlu0 %v554, 40
  %v901 = vpop.permute.xlu0 %900
  %902 = vrot.lane.b32.xlu0 %v555, 40
  %v903 = vpop.permute.xlu0 %902
  %904 = vrot.lane.b32.xlu0 %v556, 40
  %v905 = vpop.permute.xlu0 %904
  %906 = vrot.lane.b32.xlu0 %v557, 40
  %v907 = vpop.permute.xlu0 %906
  %908 = vrot.lane.b32.xlu0 %v558, 40
  %v909 = vpop.permute.xlu0 %908
  %910 = vrot.lane.b32.xlu0 %v559, 40
  %v911 = vpop.permute.xlu0 %910
  %912 = vrot.lane.b32.xlu0 %v560, 40
  %v913 = vpop.permute.xlu0 %912
  %946 = vrot.lane.b32.xlu0 %v562, 48
  %v947 = vpop.permute.xlu0 %946
  %948 = vrot.lane.b32.xlu0 %v563, 48
  %v949 = vpop.permute.xlu0 %948
  %950 = vrot.lane.b32.xlu0 %v564, 48
  %v951 = vpop.permute.xlu0 %950
  %952 = vrot.lane.b32.xlu0 %v565, 48
  %v953 = vpop.permute.xlu0 %952
  %954 = vrot.lane.b32.xlu0 %v566, 48
  %v955 = vpop.permute.xlu0 %954
  %956 = vrot.lane.b32.xlu0 %v567, 48
  %v957 = vpop.permute.xlu0 %956
  %958 = vrot.lane.b32.xlu0 %v568, 48
  %v959 = vpop.permute.xlu0 %958
  %960 = vrot.lane.b32.xlu0 %v569, 48
  %v961 = vpop.permute.xlu0 %960
  %962 = vrot.lane.b32.xlu0 %v570, 48
  %v963 = vpop.permute.xlu0 %962
  %964 = vrot.lane.b32.xlu0 %v571, 48
  %v965 = vpop.permute.xlu0 %964
  %966 = vrot.lane.b32.xlu0 %v572, 48
  %v967 = vpop.permute.xlu0 %966
  %968 = vrot.lane.b32.xlu0 %v573, 48
  %v969 = vpop.permute.xlu0 %968
  %970 = vrot.lane.b32.xlu0 %v574, 48
  %v971 = vpop.permute.xlu0 %970
  %972 = vrot.lane.b32.xlu0 %v575, 48
  %v973 = vpop.permute.xlu0 %972
  %974 = vrot.lane.b32.xlu0 %v576, 48
  %v975 = vpop.permute.xlu0 %974
  %976 = vrot.lane.b32.xlu0 %v577, 48
  %v977 = vpop.permute.xlu0 %976
  %1010 = vrot.lane.b32.xlu0 %v578, 56
  %v1011 = vpop.permute.xlu0 %1010
  %1012 = vrot.lane.b32.xlu0 %v579, 56
  %v1013 = vpop.permute.xlu0 %1012
  %1014 = vrot.lane.b32.xlu0 %v580, 56
  %v1015 = vpop.permute.xlu0 %1014
  %1016 = vrot.lane.b32.xlu0 %v581, 56
  %v1017 = vpop.permute.xlu0 %1016
  %1018 = vrot.lane.b32.xlu0 %v582, 56
  %v1019 = vpop.permute.xlu0 %1018
  %1020 = vrot.lane.b32.xlu0 %v583, 56
  %v1021 = vpop.permute.xlu0 %1020
  %1022 = vrot.lane.b32.xlu0 %v584, 56
  %v1023 = vpop.permute.xlu0 %1022
  %1024 = vrot.lane.b32.xlu0 %v585, 56
  %v1025 = vpop.permute.xlu0 %1024
  %1026 = vrot.lane.b32.xlu0 %v586, 56
  %v1027 = vpop.permute.xlu0 %1026
  %1028 = vrot.lane.b32.xlu0 %v587, 56
  %v1029 = vpop.permute.xlu0 %1028
  %1030 = vrot.lane.b32.xlu0 %v588, 56
  %v1031 = vpop.permute.xlu0 %1030
  %1032 = vrot.lane.b32.xlu0 %v589, 56
  %v1033 = vpop.permute.xlu0 %1032
  %1034 = vrot.lane.b32.xlu0 %v590, 56
  %v1035 = vpop.permute.xlu0 %1034
  %1036 = vrot.lane.b32.xlu0 %v591, 56
  %v1037 = vpop.permute.xlu0 %1036
  %1038 = vrot.lane.b32.xlu0 %v592, 56
  %v1039 = vpop.permute.xlu0 %1038
  %1040 = vrot.lane.b32.xlu0 %v593, 56
  %v1041 = vpop.permute.xlu0 %1040
  %1074 = vrot.lane.b32.xlu0 %v594, 64
  %v1075 = vpop.permute.xlu0 %1074
  %1076 = vrot.lane.b32.xlu0 %v595, 64
  %v1077 = vpop.permute.xlu0 %1076
  %1078 = vrot.lane.b32.xlu0 %v596, 64
  %v1079 = vpop.permute.xlu0 %1078
  %1080 = vrot.lane.b32.xlu0 %v597, 64
  %v1081 = vpop.permute.xlu0 %1080
  %1082 = vrot.lane.b32.xlu0 %v598, 64
  %v1083 = vpop.permute.xlu0 %1082
  %1084 = vrot.lane.b32.xlu0 %v599, 64
  %v1085 = vpop.permute.xlu0 %1084
  %1086 = vrot.lane.b32.xlu0 %v600, 64
  %v1087 = vpop.permute.xlu0 %1086
  %1088 = vrot.lane.b32.xlu0 %v601, 64
  %v1089 = vpop.permute.xlu0 %1088
  %1090 = vrot.lane.b32.xlu0 %v602, 64
  %v1091 = vpop.permute.xlu0 %1090
  %1092 = vrot.lane.b32.xlu0 %v603, 64
  %v1093 = vpop.permute.xlu0 %1092
  %1094 = vrot.lane.b32.xlu0 %v604, 64
  %v1095 = vpop.permute.xlu0 %1094
  %1096 = vrot.lane.b32.xlu0 %v605, 64
  %v1097 = vpop.permute.xlu0 %1096
  %1098 = vrot.lane.b32.xlu0 %v606, 64
  %v1099 = vpop.permute.xlu0 %1098
  %1100 = vrot.lane.b32.xlu0 %v607, 64
  %v1101 = vpop.permute.xlu0 %1100
  %1102 = vrot.lane.b32.xlu0 %v608, 64
  %v1103 = vpop.permute.xlu0 %1102
  %1104 = vrot.lane.b32.xlu0 %v609, 64
  %v1105 = vpop.permute.xlu0 %1104
  %v1122 = vsel %vm237, %v465, %v627
  %v1123 = vsel %vm237, %v466, %v629
  %v1124 = vsel %vm237, %v467, %v631
  %v1125 = vsel %vm237, %v468, %v633
  %v1126 = vsel %vm237, %v469, %v635
  %v1127 = vsel %vm237, %v470, %v637
  %v1128 = vsel %vm237, %v471, %v639
  %v1129 = vsel %vm237, %v472, %v641
  %v1130 = vsel %vm237, %v473, %v643
  %v1131 = vsel %vm237, %v474, %v645
  %v1132 = vsel %vm237, %v475, %v647
  %v1133 = vsel %vm237, %v476, %v649
  %v1134 = vsel %vm237, %v477, %v651
  %v1135 = vsel %vm237, %v478, %v653
  %v1136 = vsel %vm237, %v479, %v655
  %v1137 = vsel %vm237, %v480, %v657
  %vm1138 = vcmask 130048
  %v1139 = vsel %vm1138, %v1122, %v691
  %v1140 = vsel %vm1138, %v1123, %v693
  %v1141 = vsel %vm1138, %v1124, %v695
  %v1142 = vsel %vm1138, %v1125, %v697
  %v1143 = vsel %vm1138, %v1126, %v699
  %v1144 = vsel %vm1138, %v1127, %v701
  %v1145 = vsel %vm1138, %v1128, %v703
  %v1146 = vsel %vm1138, %v1129, %v705
  %v1147 = vsel %vm1138, %v1130, %v707
  %v1148 = vsel %vm1138, %v1131, %v709
  %v1149 = vsel %vm1138, %v1132, %v711
  %v1150 = vsel %vm1138, %v1133, %v713
  %v1151 = vsel %vm1138, %v1134, %v715
  %v1152 = vsel %vm1138, %v1135, %v717
  %v1153 = vsel %vm1138, %v1136, %v719
  %v1154 = vsel %vm1138, %v1137, %v721
  %vm1155 = vcmask 195584
  %v1156 = vsel %vm1155, %v1139, %v755
  %v1157 = vsel %vm1155, %v1140, %v757
  %v1158 = vsel %vm1155, %v1141, %v759
  %v1159 = vsel %vm1155, %v1142, %v761
  %v1160 = vsel %vm1155, %v1143, %v763
  %v1161 = vsel %vm1155, %v1144, %v765
  %v1162 = vsel %vm1155, %v1145, %v767
  %v1163 = vsel %vm1155, %v1146, %v769
  %v1164 = vsel %vm1155, %v1147, %v771
  %v1165 = vsel %vm1155, %v1148, %v773
  %v1166 = vsel %vm1155, %v1149, %v775
  %v1167 = vsel %vm1155, %v1150, %v777
  %v1168 = vsel %vm1155, %v1151, %v779
  %v1169 = vsel %vm1155, %v1152, %v781
  %v1170 = vsel %vm1155, %v1153, %v783
  %v1171 = vsel %vm1155, %v1154, %v785
  %vm1172 = vcmask 261120
  %v1173 = vsel %vm1172, %v1156, %v819
  %v1174 = vsel %vm1172, %v1157, %v821
  %v1175 = vsel %vm1172, %v1158, %v823
  %v1176 = vsel %vm1172, %v1159, %v825
  %v1177 = vsel %vm1172, %v1160, %v827
  %v1178 = vsel %vm1172, %v1161, %v829
  %v1179 = vsel %vm1172, %v1162, %v831
  %v1180 = vsel %vm1172, %v1163, %v833
  %v1181 = vsel %vm1172, %v1164, %v835
  %v1182 = vsel %vm1172, %v1165, %v837
  %v1183 = vsel %vm1172, %v1166, %v839
  %v1184 = vsel %vm1172, %v1167, %v841
  %v1185 = vsel %vm1172, %v1168, %v843
  %v1186 = vsel %vm1172, %v1169, %v845
  %v1187 = vsel %vm1172, %v1170, %v847
  %v1188 = vsel %vm1172, %v1171, %v849
  %vm1189 = vcmask 326656
  %v1190 = vsel %vm1189, %v1173, %v883
  %v1191 = vsel %vm1189, %v1174, %v885
  %v1192 = vsel %vm1189, %v1175, %v887
  %v1193 = vsel %vm1189, %v1176, %v889
  %v1194 = vsel %vm1189, %v1177, %v891
  %v1195 = vsel %vm1189, %v1178, %v893
  %v1196 = vsel %vm1189, %v1179, %v895
  %v1197 = vsel %vm1189, %v1180, %v897
  %v1198 = vsel %vm1189, %v1181, %v899
  %v1199 = vsel %vm1189, %v1182, %v901
  %v1200 = vsel %vm1189, %v1183, %v903
  %v1201 = vsel %vm1189, %v1184, %v905
  %v1202 = vsel %vm1189, %v1185, %v907
  %v1203 = vsel %vm1189, %v1186, %v909
  %v1204 = vsel %vm1189, %v1187, %v911
  %v1205 = vsel %vm1189, %v1188, %v913
  %vm1206 = vcmask 392192
  %v1207 = vsel %vm1206, %v1190, %v947
  %v1208 = vsel %vm1206, %v1191, %v949
  %v1209 = vsel %vm1206, %v1192, %v951
  %v1210 = vsel %vm1206, %v1193, %v953
  %v1211 = vsel %vm1206, %v1194, %v955
  %v1212 = vsel %vm1206, %v1195, %v957
  %v1213 = vsel %vm1206, %v1196, %v959
  %v1214 = vsel %vm1206, %v1197, %v961
  %v1215 = vsel %vm1206, %v1198, %v963
  %v1216 = vsel %vm1206, %v1199, %v965
  %v1217 = vsel %vm1206, %v1200, %v967
  %v1218 = vsel %vm1206, %v1201, %v969
  %v1219 = vsel %vm1206, %v1202, %v971
  %v1220 = vsel %vm1206, %v1203, %v973
  %v1221 = vsel %vm1206, %v1204, %v975
  %v1222 = vsel %vm1206, %v1205, %v977
  %vm1223 = vcmask 457728
  %v1224 = vsel %vm1223, %v1207, %v1011
  %v1225 = vsel %vm1223, %v1208, %v1013
  %v1226 = vsel %vm1223, %v1209, %v1015
  %v1227 = vsel %vm1223, %v1210, %v1017
  %v1228 = vsel %vm1223, %v1211, %v1019
  %v1229 = vsel %vm1223, %v1212, %v1021
  %v1230 = vsel %vm1223, %v1213, %v1023
  %v1231 = vsel %vm1223, %v1214, %v1025
  %v1232 = vsel %vm1223, %v1215, %v1027
  %v1233 = vsel %vm1223, %v1216, %v1029
  %v1234 = vsel %vm1223, %v1217, %v1031
  %v1235 = vsel %vm1223, %v1218, %v1033
  %v1236 = vsel %vm1223, %v1219, %v1035
  %v1237 = vsel %vm1223, %v1220, %v1037
  %v1238 = vsel %vm1223, %v1221, %v1039
  %v1239 = vsel %vm1223, %v1222, %v1041
  %vm1240 = vcmask 523264
  %v1241 = vsel %vm1240, %v1224, %v1075
  %v1242 = vsel %vm1240, %v1225, %v1077
  %v1243 = vsel %vm1240, %v1226, %v1079
  %v1244 = vsel %vm1240, %v1227, %v1081
  %v1245 = vsel %vm1240, %v1228, %v1083
  %v1246 = vsel %vm1240, %v1229, %v1085
  %v1247 = vsel %vm1240, %v1230, %v1087
  %v1248 = vsel %vm1240, %v1231, %v1089
  %v1249 = vsel %vm1240, %v1232, %v1091
  %v1250 = vsel %vm1240, %v1233, %v1093
  %v1251 = vsel %vm1240, %v1234, %v1095
  %v1252 = vsel %vm1240, %v1235, %v1097
  %v1253 = vsel %vm1240, %v1236, %v1099
  %v1254 = vsel %vm1240, %v1237, %v1101
  %v1255 = vsel %vm1240, %v1238, %v1103
  %v1256 = vsel %vm1240, %v1239, %v1105
  %v1257 = vpack.c.bf16 %v1242, %v1241
  %v1258 = vpack.c.bf16 %v1244, %v1243
  %v1259 = vpack.c.bf16 %v1246, %v1245
  %v1260 = vpack.c.bf16 %v1248, %v1247
  %v1261 = vpack.c.bf16 %v1250, %v1249
  %v1262 = vpack.c.bf16 %v1252, %v1251
  %v1263 = vpack.c.bf16 %v1254, %v1253
  %v1264 = vpack.c.bf16 %v1256, %v1255
  %v1265 = vld [vmem:[%s4] sm:$0xf]
  %v1266 = vld [vmem:[%s4 + $0x4] sm:$0xf]
  %v1267 = vld [vmem:[%s4 + $0x8] sm:$0xf]
  %v1268 = vld [vmem:[%s4 + $0xc] sm:$0xf]
  %v1269 = vld [vmem:[%s4 + $0x10] sm:$0xf]
  %v1270 = vld [vmem:[%s4 + $0x14] sm:$0xf]
  %v1271 = vld [vmem:[%s4 + $0x18] sm:$0xf]
  %v1272 = vld [vmem:[%s4 + $0x1c] sm:$0xf]
  %v1273 = vld [vmem:[%s4 + $0x20] sm:$0xf]
  %v1283 = vunpack.c.l.b16 %v1265
  %v1284 = vunpack.c.l.b16 %v1266
  %v1285 = vunpack.c.l.b16 %v1267
  %v1286 = vunpack.c.l.b16 %v1268
  %v1287 = vunpack.c.l.b16 %v1269
  %v1288 = vunpack.c.l.b16 %v1270
  %v1289 = vunpack.c.l.b16 %v1271
  %v1290 = vunpack.c.l.b16 %v1272
  %v1291 = vunpack.c.l.b16 %v1273
  %v1292 = vpack.c.b16 %v1284, %v1283
  %v1293 = vpack.c.b16 %v1286, %v1285
  %v1294 = vpack.c.b16 %v1288, %v1287
  %v1295 = vpack.c.b16 %v1290, %v1289
  %v1296 = vpack.c.b16 %v1291, %v1291
  %vm1301 = vcmask 588800
  %v1303 = vsel %vm1301, %v1257, 0
  %v1306 = vsel %vm1301, %v1258, 0
  %v1309 = vsel %vm1301, %v1259, 0
  %v1312 = vsel %vm1301, %v1260, 0
  %v1315 = vsel %vm1301, %v1261, 0
  %v1318 = vsel %vm1301, %v1262, 0
  %v1321 = vsel %vm1301, %v1263, 0
  %v1324 = vsel %vm1301, %v1264, 0
  %vm1326 = vcmask 1043456
  %v1328 = vsel %vm1326, %v1296, 0
  %1330 = vmatprep.subr.bf16.mxu0 0
  %1331 = vmatpush1.bf16.msra.mxu0 0
  %1332 = vmatprep.subr.bf16.mxu0 0
  %1333 = vmatpush1.bf16.msra.mxu0 0
  %1334 = vmatprep.subr.bf16.mxu0 0
  %1335 = vmatpush1.bf16.msra.mxu0 0
  %1336 = vmatprep.subr.bf16.mxu0 0
  %1337 = vmatpush1.bf16.msra.mxu0 %v1328
  %1338 = vmatprep.subr.bf16.mxu0 0
  %1339 = vmatpush1.bf16.msra.mxu0 %v1295
  %1340 = vmatprep.subr.bf16.mxu0 0
  %1341 = vmatpush1.bf16.msra.mxu0 %v1294
  %1342 = vmatprep.subr.bf16.mxu0 0
  %1343 = vmatpush1.bf16.msra.mxu0 %v1293
  %1344 = vmatprep.subr.bf16.mxu0 0
  %1345 = vmatpush1.bf16.msra.mxu0 %v1292
  %1346 = vmatprep.subr.bf16.mxu0 0
  %1347 = vmatpush2.bf16.msra.mxu0 0
  %1348 = vmatprep.subr.bf16.mxu0 0
  %1349 = vmatpush2.bf16.msra.mxu0 0
  %1350 = vmatprep.subr.bf16.mxu0 0
  %1351 = vmatpush2.bf16.msra.mxu0 0
  %1352 = vmatprep.subr.bf16.mxu0 0
  %1353 = vmatpush2.bf16.msra.mxu0 0
  %1354 = vmatprep.subr.bf16.mxu0 0
  %1355 = vmatpush2.bf16.msra.mxu0 0
  %1356 = vmatprep.subr.bf16.mxu0 0
  %1357 = vmatpush2.bf16.msra.mxu0 0
  %1358 = vmatprep.subr.bf16.mxu0 0
  %1359 = vmatpush2.bf16.msra.mxu0 0
  %1360 = vmatprep.subr.bf16.mxu0 0
  %1361 = vmatpush2.bf16.msra.mxu0 0
  %1362 = vmatprep.mubr.bf16.mxu0 0
  %1363 = vmatmul.mubr.bf16.gmra.mxu0 %v1303
  %v1364 = vpop.f32.mrf.mxu0
  %v1365 = vadd.f32 0.0, %v1364
  %v1366 = vpop.f32.mrf.mxu0
  %v1367 = vpop.f32.mrf.mxu0
  %v1368 = vadd.f32 0.0, %v1367
  %v1369 = vpop.f32.mrf.mxu0
  %1370 = vmatprep.mubr.bf16.mxu0 0
  %1371 = vmatmul.mubr.bf16.gmra.mxu0 %v1306
  %v1372 = vpop.f32.mrf.mxu0
  %v1373 = vadd.f32 0.0, %v1372
  %v1374 = vpop.f32.mrf.mxu0
  %v1375 = vpop.f32.mrf.mxu0
  %v1376 = vadd.f32 0.0, %v1375
  %v1377 = vpop.f32.mrf.mxu0
  %1378 = vmatprep.mubr.bf16.mxu0 0
  %1379 = vmatmul.mubr.bf16.gmra.mxu0 %v1309
  %v1380 = vpop.f32.mrf.mxu0
  %v1381 = vadd.f32 0.0, %v1380
  %v1382 = vpop.f32.mrf.mxu0
  %v1383 = vpop.f32.mrf.mxu0
  %v1384 = vadd.f32 0.0, %v1383
  %v1385 = vpop.f32.mrf.mxu0
  %1386 = vmatprep.mubr.bf16.mxu0 0
  %1387 = vmatmul.mubr.bf16.gmra.mxu0 %v1312
  %v1388 = vpop.f32.mrf.mxu0
  %v1389 = vadd.f32 0.0, %v1388
  %v1390 = vpop.f32.mrf.mxu0
  %v1391 = vpop.f32.mrf.mxu0
  %v1392 = vadd.f32 0.0, %v1391
  %v1393 = vpop.f32.mrf.mxu0
  %1394 = vmatprep.mubr.bf16.mxu0 0
  %1395 = vmatmul.mubr.bf16.gmra.mxu0 %v1315
  %v1396 = vpop.f32.mrf.mxu0
  %v1397 = vadd.f32 0.0, %v1396
  %v1398 = vpop.f32.mrf.mxu0
  %v1399 = vpop.f32.mrf.mxu0
  %v1400 = vadd.f32 0.0, %v1399
  %v1401 = vpop.f32.mrf.mxu0
  %1402 = vmatprep.mubr.bf16.mxu0 0
  %1403 = vmatmul.mubr.bf16.gmra.mxu0 %v1318
  %v1404 = vpop.f32.mrf.mxu0
  %v1405 = vadd.f32 0.0, %v1404
  %v1406 = vpop.f32.mrf.mxu0
  %v1407 = vpop.f32.mrf.mxu0
  %v1408 = vadd.f32 0.0, %v1407
  %v1409 = vpop.f32.mrf.mxu0
  %1410 = vmatprep.mubr.bf16.mxu0 0
  %1411 = vmatmul.mubr.bf16.gmra.mxu0 %v1321
  %v1412 = vpop.f32.mrf.mxu0
  %v1413 = vadd.f32 0.0, %v1412
  %v1414 = vpop.f32.mrf.mxu0
  %v1415 = vpop.f32.mrf.mxu0
  %v1416 = vadd.f32 0.0, %v1415
  %v1417 = vpop.f32.mrf.mxu0
  %1418 = vmatprep.mubr.bf16.mxu0 0
  %1419 = vmatmul.mubr.bf16.gmra.mxu0 %v1324
  %v1420 = vpop.f32.mrf.mxu0
  %v1421 = vadd.f32 0.0, %v1420
  %v1422 = vpop.f32.mrf.mxu0
  %v1423 = vpop.f32.mrf.mxu0
  %v1424 = vadd.f32 0.0, %v1423
  %v1425 = vpop.f32.mrf.mxu0
  %1426 = vdwg.mxu0
  %v1427 = vld [vmem:[%s5] sm:$0x1]
  %v1428 = vld [vmem:[%s6] sm:$0x1]
  %v1429 = vsel %vm237, %v1365, 0.0
  %v1430 = vsel %vm237, %v1368, 0.0
  %v1431 = vadd.f32 %v1429, %v1430
  %v1432 = vsel %vm237, %v1373, 0.0
  %v1433 = vadd.f32 %v1431, %v1432
  %v1434 = vsel %vm237, %v1376, 0.0
  %v1435 = vadd.f32 %v1433, %v1434
  %v1436 = vsel %vm237, %v1381, 0.0
  %v1437 = vadd.f32 %v1435, %v1436
  %v1438 = vsel %vm237, %v1384, 0.0
  %v1439 = vadd.f32 %v1437, %v1438
  %v1440 = vsel %vm237, %v1389, 0.0
  %v1441 = vadd.f32 %v1439, %v1440
  %v1442 = vsel %vm237, %v1392, 0.0
  %v1443 = vadd.f32 %v1441, %v1442
  %v1444 = vsel %vm237, %v1397, 0.0
  %v1445 = vadd.f32 %v1443, %v1444
  %v1446 = vsel %vm237, %v1400, 0.0
  %v1447 = vadd.f32 %v1445, %v1446
  %v1448 = vsel %vm237, %v1405, 0.0
  %v1449 = vadd.f32 %v1447, %v1448
  %v1450 = vsel %vm237, %v1408, 0.0
  %v1451 = vadd.f32 %v1449, %v1450
  %v1452 = vsel %vm237, %v1413, 0.0
  %v1453 = vadd.f32 %v1451, %v1452
  %v1454 = vsel %vm237, %v1416, 0.0
  %v1455 = vadd.f32 %v1453, %v1454
  %v1456 = vsel %vm237, %v1421, 0.0
  %v1457 = vadd.f32 %v1455, %v1456
  %v1458 = vsel %vm237, %v1424, 0.0
  %v1459 = vadd.f32 %v1457, %v1458
  %v1460 = vrot.slane %v1459, 4
  %v1461 = vadd.f32 %v1459, %v1460
  %v1462 = vrot.slane %v1461, 2
  %v1463 = vadd.f32 %v1461, %v1462
  %v1464 = vrot.slane %v1463, 1
  %v1465 = vadd.f32 %v1463, %v1464
  %v1466 = vmul.f32 %v1365, %v1365
  %v1467 = vmul.f32 %v1368, %v1368
  %v1468 = vmul.f32 %v1373, %v1373
  %v1469 = vmul.f32 %v1376, %v1376
  %v1470 = vmul.f32 %v1381, %v1381
  %v1471 = vmul.f32 %v1384, %v1384
  %v1472 = vmul.f32 %v1389, %v1389
  %v1473 = vmul.f32 %v1392, %v1392
  %v1474 = vmul.f32 %v1397, %v1397
  %v1475 = vmul.f32 %v1400, %v1400
  %v1476 = vmul.f32 %v1405, %v1405
  %v1477 = vmul.f32 %v1408, %v1408
  %v1478 = vmul.f32 %v1413, %v1413
  %v1479 = vmul.f32 %v1416, %v1416
  %v1480 = vmul.f32 %v1421, %v1421
  %v1481 = vmul.f32 %v1424, %v1424
  %v1482 = vsel %vm237, %v1466, 0.0
  %v1483 = vsel %vm237, %v1467, 0.0
  %v1484 = vadd.f32 %v1482, %v1483
  %v1485 = vsel %vm237, %v1468, 0.0
  %v1486 = vadd.f32 %v1484, %v1485
  %v1487 = vsel %vm237, %v1469, 0.0
  %v1488 = vadd.f32 %v1486, %v1487
  %v1489 = vsel %vm237, %v1470, 0.0
  %v1490 = vadd.f32 %v1488, %v1489
  %v1491 = vsel %vm237, %v1471, 0.0
  %v1492 = vadd.f32 %v1490, %v1491
  %v1493 = vsel %vm237, %v1472, 0.0
  %v1494 = vadd.f32 %v1492, %v1493
  %v1495 = vsel %vm237, %v1473, 0.0
  %v1496 = vadd.f32 %v1494, %v1495
  %v1497 = vsel %vm237, %v1474, 0.0
  %v1498 = vadd.f32 %v1496, %v1497
  %v1499 = vsel %vm237, %v1475, 0.0
  %v1500 = vadd.f32 %v1498, %v1499
  %v1501 = vsel %vm237, %v1476, 0.0
  %v1502 = vadd.f32 %v1500, %v1501
  %v1503 = vsel %vm237, %v1477, 0.0
  %v1504 = vadd.f32 %v1502, %v1503
  %v1505 = vsel %vm237, %v1478, 0.0
  %v1506 = vadd.f32 %v1504, %v1505
  %v1507 = vsel %vm237, %v1479, 0.0
  %v1508 = vadd.f32 %v1506, %v1507
  %v1509 = vsel %vm237, %v1480, 0.0
  %v1510 = vadd.f32 %v1508, %v1509
  %v1511 = vsel %vm237, %v1481, 0.0
  %v1512 = vadd.f32 %v1510, %v1511
  %v1513 = vrot.slane %v1512, 4
  %v1514 = vadd.f32 %v1512, %v1513
  %v1515 = vrot.slane %v1514, 2
  %v1516 = vadd.f32 %v1514, %v1515
  %v1517 = vrot.slane %v1516, 1
  %v1518 = vadd.f32 %v1516, %v1517
  %v1519 = vmul.f32 %v1465, 0.0078125
  %v1520 = vmul.f32 %v1518, 0.0078125
  %v1521 = vmul.f32 %v1519, %v1519
  %v1522 = vsub.f32 %v1520, %v1521
  %v1523 = vadd.f32 %v1522, 1e-05
  %v1524 = vrsqrt.pop %v1523
  %v1525 = vmul.f32 %v1427, %v1524
  %v1526 = vmul.f32 %v1519, %v1525
  %v1527 = vsub.f32 %v1428, %v1526
  %v1529 = vlaneseq
  %v1530 = vshrl.u32 %v1529, 7
  %v1531 = vsub.s32 0, %v1530
  %v1532 = vrot.slane %v1525, %v1531
  %v1534 = vmul.f32 %v1365, %v1532
  %v1535 = vmul.f32 %v1368, %v1532
  %v1536 = vmul.f32 %v1373, %v1532
  %v1537 = vmul.f32 %v1376, %v1532
  %v1538 = vmul.f32 %v1381, %v1532
  %v1539 = vmul.f32 %v1384, %v1532
  %v1540 = vmul.f32 %v1389, %v1532
  %v1541 = vmul.f32 %v1392, %v1532
  %v1542 = vmul.f32 %v1397, %v1532
  %v1543 = vmul.f32 %v1400, %v1532
  %v1544 = vmul.f32 %v1405, %v1532
  %v1545 = vmul.f32 %v1408, %v1532
  %v1546 = vmul.f32 %v1413, %v1532
  %v1547 = vmul.f32 %v1416, %v1532
  %v1548 = vmul.f32 %v1421, %v1532
  %v1549 = vmul.f32 %v1424, %v1532
  %v1551 = vlaneseq
  %v1552 = vshrl.u32 %v1551, 7
  %v1553 = vsub.s32 0, %v1552
  %v1554 = vrot.slane %v1527, %v1553
  %v1556 = vadd.f32 %v1534, %v1554
  %v1557 = vadd.f32 %v1535, %v1554
  %v1558 = vadd.f32 %v1536, %v1554
  %v1559 = vadd.f32 %v1537, %v1554
  %v1560 = vadd.f32 %v1538, %v1554
  %v1561 = vadd.f32 %v1539, %v1554
  %v1562 = vadd.f32 %v1540, %v1554
  %v1563 = vadd.f32 %v1541, %v1554
  %v1564 = vadd.f32 %v1542, %v1554
  %v1565 = vadd.f32 %v1543, %v1554
  %v1566 = vadd.f32 %v1544, %v1554
  %v1567 = vadd.f32 %v1545, %v1554
  %v1568 = vadd.f32 %v1546, %v1554
  %v1569 = vadd.f32 %v1547, %v1554
  %v1570 = vadd.f32 %v1548, %v1554
  %v1571 = vadd.f32 %v1549, %v1554
  %v1572 = vld [vmem:[%s7] sm:$0x1]
  %v1573 = vld [vmem:[%s8] sm:$0x1]
  %vm1574 = vcmask 130112
  %v1575 = vsel %vm1574, %v173, 0.0
  %v1576 = vsel %vm1574, %v176, 0.0
  %v1577 = vadd.f32 %v1575, %v1576
  %v1578 = vsel %vm1574, %v181, 0.0
  %v1579 = vadd.f32 %v1577, %v1578
  %v1580 = vsel %vm1574, %v184, 0.0
  %v1581 = vadd.f32 %v1579, %v1580
  %v1582 = vsel %vm1574, %v189, 0.0
  %v1583 = vadd.f32 %v1581, %v1582
  %v1584 = vsel %vm1574, %v192, 0.0
  %v1585 = vadd.f32 %v1583, %v1584
  %v1586 = vsel %vm1574, %v197, 0.0
  %v1587 = vadd.f32 %v1585, %v1586
  %v1588 = vsel %vm1574, %v200, 0.0
  %v1589 = vadd.f32 %v1587, %v1588
  %v1590 = vsel %vm1574, %v205, 0.0
  %v1591 = vadd.f32 %v1589, %v1590
  %v1592 = vsel %vm1574, %v208, 0.0
  %v1593 = vadd.f32 %v1591, %v1592
  %v1594 = vsel %vm1574, %v213, 0.0
  %v1595 = vadd.f32 %v1593, %v1594
  %v1596 = vsel %vm1574, %v216, 0.0
  %v1597 = vadd.f32 %v1595, %v1596
  %v1598 = vsel %vm1574, %v221, 0.0
  %v1599 = vadd.f32 %v1597, %v1598
  %v1600 = vsel %vm1574, %v224, 0.0
  %v1601 = vadd.f32 %v1599, %v1600
  %v1602 = vsel %vm1574, %v229, 0.0
  %v1603 = vadd.f32 %v1601, %v1602
  %v1604 = vsel %vm1574, %v232, 0.0
  %v1605 = vadd.f32 %v1603, %v1604
  %v1606 = vrot.slane %v1605, 4
  %v1607 = vadd.f32 %v1605, %v1606
  %v1608 = vrot.slane %v1607, 2
  %v1609 = vadd.f32 %v1607, %v1608
  %v1610 = vrot.slane %v1609, 1
  %v1611 = vadd.f32 %v1609, %v1610
  %v1612 = vsel %vm1574, %v275, 0.0
  %v1613 = vsel %vm1574, %v276, 0.0
  %v1614 = vadd.f32 %v1612, %v1613
  %v1615 = vsel %vm1574, %v277, 0.0
  %v1616 = vadd.f32 %v1614, %v1615
  %v1617 = vsel %vm1574, %v278, 0.0
  %v1618 = vadd.f32 %v1616, %v1617
  %v1619 = vsel %vm1574, %v279, 0.0
  %v1620 = vadd.f32 %v1618, %v1619
  %v1621 = vsel %vm1574, %v280, 0.0
  %v1622 = vadd.f32 %v1620, %v1621
  %v1623 = vsel %vm1574, %v281, 0.0
  %v1624 = vadd.f32 %v1622, %v1623
  %v1625 = vsel %vm1574, %v282, 0.0
  %v1626 = vadd.f32 %v1624, %v1625
  %v1627 = vsel %vm1574, %v283, 0.0
  %v1628 = vadd.f32 %v1626, %v1627
  %v1629 = vsel %vm1574, %v284, 0.0
  %v1630 = vadd.f32 %v1628, %v1629
  %v1631 = vsel %vm1574, %v285, 0.0
  %v1632 = vadd.f32 %v1630, %v1631
  %v1633 = vsel %vm1574, %v286, 0.0
  %v1634 = vadd.f32 %v1632, %v1633
  %v1635 = vsel %vm1574, %v287, 0.0
  %v1636 = vadd.f32 %v1634, %v1635
  %v1637 = vsel %vm1574, %v288, 0.0
  %v1638 = vadd.f32 %v1636, %v1637
  %v1639 = vsel %vm1574, %v289, 0.0
  %v1640 = vadd.f32 %v1638, %v1639
  %v1641 = vsel %vm1574, %v290, 0.0
  %v1642 = vadd.f32 %v1640, %v1641
  %v1643 = vrot.slane %v1642, 4
  %v1644 = vadd.f32 %v1642, %v1643
  %v1645 = vrot.slane %v1644, 2
  %v1646 = vadd.f32 %v1644, %v1645
  %v1647 = vrot.slane %v1646, 1
  %v1648 = vadd.f32 %v1646, %v1647
  %v1649 = vmul.f32 %v1611, 0.0078125
  %v1650 = vmul.f32 %v1648, 0.0078125
  %v1651 = vmul.f32 %v1649, %v1649
  %v1652 = vsub.f32 %v1650, %v1651
  %v1653 = vadd.f32 %v1652, 1e-05
  %v1654 = vrsqrt.pop %v1653
  %v1657 = vunpack.c.l.s4 1966171168
  %v1658 = vunpack.c.0.s8 %v1657
  %v1659 = vlaneseq
  %v1660 = vshrl.u32 %v1659, 7
  %v1661 = vsub.s32 %v1658, %v1660
  %v1662 = vrot.slane %v1654, %v1661
  %v1664 = vunpack.c.l.s4 1966171168
  %v1665 = vunpack.c.0.s8 %v1664
  %v1666 = vlaneseq
  %v1667 = vshrl.u32 %v1666, 7
  %v1668 = vsub.s32 %v1665, %v1667
  %v1669 = vrot.slane %v1662, %v1668
  %1670 = vrot.lane.b32.xlu0 %v1669, 120
  %v1671 = vpop.permute.xlu0 %1670
  %v1673 = vmul.f32 %v1572, %v1671
  %v1675 = vlaneseq
  %v1676 = vshrl.u32 %v1675, 7
  %v1677 = vsub.s32 0, %v1676
  %v1678 = vrot.slane %v1673, %v1677
  %1679 = vrot.lane.b32.xlu0 %v1678, 8
  %v1680 = vpop.permute.xlu0 %1679
  %v1682 = vmul.f32 %v1649, %v1680
  %v1685 = vunpack.c.l.s4 1966171168
  %v1686 = vunpack.c.0.s8 %v1685
  %v1687 = vlaneseq
  %v1688 = vshrl.u32 %v1687, 7
  %v1689 = vsub.s32 %v1686, %v1688
  %v1690 = vrot.slane %v1682, %v1689
  %v1692 = vunpack.c.l.s4 1966171168
  %v1693 = vunpack.c.0.s8 %v1692
  %v1694 = vlaneseq
  %v1695 = vshrl.u32 %v1694, 7
  %v1696 = vsub.s32 %v1693, %v1695
  %v1697 = vrot.slane %v1690, %v1696
  %1698 = vrot.lane.b32.xlu0 %v1697, 120
  %v1699 = vpop.permute.xlu0 %1698
  %v1701 = vsub.f32 %v1573, %v1699
  %v1702 = vmul.f32 %v173, %v1680
  %v1703 = vmul.f32 %v176, %v1680
  %v1704 = vmul.f32 %v181, %v1680
  %v1705 = vmul.f32 %v184, %v1680
  %v1706 = vmul.f32 %v189, %v1680
  %v1707 = vmul.f32 %v192, %v1680
  %v1708 = vmul.f32 %v197, %v1680
  %v1709 = vmul.f32 %v200, %v1680
  %v1710 = vmul.f32 %v205, %v1680
  %v1711 = vmul.f32 %v208, %v1680
  %v1712 = vmul.f32 %v213, %v1680
  %v1713 = vmul.f32 %v216, %v1680
  %v1714 = vmul.f32 %v221, %v1680
  %v1715 = vmul.f32 %v224, %v1680
  %v1716 = vmul.f32 %v229, %v1680
  %v1717 = vmul.f32 %v232, %v1680
  %v1719 = vlaneseq
  %v1720 = vshrl.u32 %v1719, 7
  %v1721 = vsub.s32 0, %v1720
  %v1722 = vrot.slane %v1701, %v1721
  %1723 = vrot.lane.b32.xlu0 %v1722, 8
  %v1724 = vpop.permute.xlu0 %1723
  %v1726 = vadd.f32 %v1702, %v1724
  %v1727 = vadd.f32 %v1703, %v1724
  %v1728 = vadd.f32 %v1704, %v1724
  %v1729 = vadd.f32 %v1705, %v1724
  %v1730 = vadd.f32 %v1706, %v1724
  %v1731 = vadd.f32 %v1707, %v1724
  %v1732 = vadd.f32 %v1708, %v1724
  %v1733 = vadd.f32 %v1709, %v1724
  %v1734 = vadd.f32 %v1710, %v1724
  %v1735 = vadd.f32 %v1711, %v1724
  %v1736 = vadd.f32 %v1712, %v1724
  %v1737 = vadd.f32 %v1713, %v1724
  %v1738 = vadd.f32 %v1714, %v1724
  %v1739 = vadd.f32 %v1715, %v1724
  %v1740 = vadd.f32 %v1716, %v1724
  %v1741 = vadd.f32 %v1717, %v1724
  %1758 = vrot.lane.b32.xlu0 %v1726, 120
  %v1759 = vpop.permute.xlu0 %1758
  %1760 = vrot.lane.b32.xlu0 %v1727, 120
  %v1761 = vpop.permute.xlu0 %1760
  %1762 = vrot.lane.b32.xlu0 %v1728, 120
  %v1763 = vpop.permute.xlu0 %1762
  %1764 = vrot.lane.b32.xlu0 %v1729, 120
  %v1765 = vpop.permute.xlu0 %1764
  %1766 = vrot.lane.b32.xlu0 %v1730, 120
  %v1767 = vpop.permute.xlu0 %1766
  %1768 = vrot.lane.b32.xlu0 %v1731, 120
  %v1769 = vpop.permute.xlu0 %1768
  %1770 = vrot.lane.b32.xlu0 %v1732, 120
  %v1771 = vpop.permute.xlu0 %1770
  %1772 = vrot.lane.b32.xlu0 %v1733, 120
  %v1773 = vpop.permute.xlu0 %1772
  %1774 = vrot.lane.b32.xlu0 %v1734, 120
  %v1775 = vpop.permute.xlu0 %1774
  %1776 = vrot.lane.b32.xlu0 %v1735, 120
  %v1777 = vpop.permute.xlu0 %1776
  %1778 = vrot.lane.b32.xlu0 %v1736, 120
  %v1779 = vpop.permute.xlu0 %1778
  %1780 = vrot.lane.b32.xlu0 %v1737, 120
  %v1781 = vpop.permute.xlu0 %1780
  %1782 = vrot.lane.b32.xlu0 %v1738, 120
  %v1783 = vpop.permute.xlu0 %1782
  %1784 = vrot.lane.b32.xlu0 %v1739, 120
  %v1785 = vpop.permute.xlu0 %1784
  %1786 = vrot.lane.b32.xlu0 %v1740, 120
  %v1787 = vpop.permute.xlu0 %1786
  %1788 = vrot.lane.b32.xlu0 %v1741, 120
  %v1789 = vpop.permute.xlu0 %1788
  %v1806 = vadd.f32 %v1556, %v1759
  %v1807 = vadd.f32 %v1557, %v1761
  %v1808 = vadd.f32 %v1558, %v1763
  %v1809 = vadd.f32 %v1559, %v1765
  %v1810 = vadd.f32 %v1560, %v1767
  %v1811 = vadd.f32 %v1561, %v1769
  %v1812 = vadd.f32 %v1562, %v1771
  %v1813 = vadd.f32 %v1563, %v1773
  %v1814 = vadd.f32 %v1564, %v1775
  %v1815 = vadd.f32 %v1565, %v1777
  %v1816 = vadd.f32 %v1566, %v1779
  %v1817 = vadd.f32 %v1567, %v1781
  %v1818 = vadd.f32 %v1568, %v1783
  %v1819 = vadd.f32 %v1569, %v1785
  %v1820 = vadd.f32 %v1570, %v1787
  %v1821 = vadd.f32 %v1571, %v1789
  %v1822 = vmax.f32 %v1806, 0.0
  %v1823 = vmax.f32 %v1807, 0.0
  %v1824 = vmax.f32 %v1808, 0.0
  %v1825 = vmax.f32 %v1809, 0.0
  %v1826 = vmax.f32 %v1810, 0.0
  %v1827 = vmax.f32 %v1811, 0.0
  %v1828 = vmax.f32 %v1812, 0.0
  %v1829 = vmax.f32 %v1813, 0.0
  %v1830 = vmax.f32 %v1814, 0.0
  %v1831 = vmax.f32 %v1815, 0.0
  %v1832 = vmax.f32 %v1816, 0.0
  %v1833 = vmax.f32 %v1817, 0.0
  %v1834 = vmax.f32 %v1818, 0.0
  %v1835 = vmax.f32 %v1819, 0.0
  %v1836 = vmax.f32 %v1820, 0.0
  %v1837 = vmax.f32 %v1821, 0.0
  %1838 = vst.msk [vmem:[%s9] sm:$0xff] %vm237, %v1822
  %1839 = vst.msk [vmem:[%s9 + $0x8] sm:$0xff] %vm237, %v1823
  %1840 = vst.msk [vmem:[%s9 + $0x10] sm:$0xff] %vm237, %v1824
  %1841 = vst.msk [vmem:[%s9 + $0x18] sm:$0xff] %vm237, %v1825
  %1842 = vst.msk [vmem:[%s9 + $0x20] sm:$0xff] %vm237, %v1826
  %1843 = vst.msk [vmem:[%s9 + $0x28] sm:$0xff] %vm237, %v1827
  %1844 = vst.msk [vmem:[%s9 + $0x30] sm:$0xff] %vm237, %v1828
  %1845 = vst.msk [vmem:[%s9 + $0x38] sm:$0xff] %vm237, %v1829
  %1846 = vst.msk [vmem:[%s9 + $0x40] sm:$0xff] %vm237, %v1830
  %1847 = vst.msk [vmem:[%s9 + $0x48] sm:$0xff] %vm237, %v1831
  %1848 = vst.msk [vmem:[%s9 + $0x50] sm:$0xff] %vm237, %v1832
  %1849 = vst.msk [vmem:[%s9 + $0x58] sm:$0xff] %vm237, %v1833
  %1850 = vst.msk [vmem:[%s9 + $0x60] sm:$0xff] %vm237, %v1834
  %1851 = vst.msk [vmem:[%s9 + $0x68] sm:$0xff] %vm237, %v1835
  %1852 = vst.msk [vmem:[%s9 + $0x70] sm:$0xff] %vm237, %v1836
  %1853 = vst.msk [vmem:[%s9 + $0x78] sm:$0xff] %vm237, %v1837
  // Predicated region
  $region38: #{tpu_custom_call.1} parent=0 // pred_check
    _
  $region39: #{tpu_custom_call.1} parent=0 // pred_check_branch
    %1855 = sbr.rel (0) target = $region41
  $region40: #{tpu_custom_call.1} parent=0 // pred_region
    _
  $region41: #{tpu_custom_call.1} parent=0 // pred_fallthru
    _
  // Predicated region
  $region42: #{tpu_custom_call.1} parent=0 // pred_check
    _
  $region43: #{tpu_custom_call.1} parent=0 // pred_check_branch
    %1857 = sbr.rel (0) target = $region45
  $region44: #{tpu_custom_call.1} parent=0 // pred_region
    _
  $region45: #{tpu_custom_call.1} parent=0 // pred_fallthru
    _

</llo_original>
